<compile_context>
chip_gen: v7x
topology: tpu7x:2x2x1
jax: 0.10.0
libtpu: 0.0.40
codegen_flags: <defaults>
</compile_context>

<pallas_src>
import math
import functools

import jax
import jax.numpy as jnp
from jax.experimental import pallas as pl
from jax.experimental.pallas import tpu as pltpu


# ----------------------------------------------------------------------------
# Single fused kernel: embedding -> attention -> residual+LN -> classifier
# ----------------------------------------------------------------------------
def fused_model_kernel(ids_ref, tab_ref,
                       wq_ref, bq_ref, wk_ref, bk_ref, wv_ref, bv_ref,
                       wo_ref, bo_ref, gamma_ref, beta_ref,
                       w1_ref, b1_ref, w2_ref, b2_ref,
                       out_ref, attn_mean_ref,
                       *, B, L, D, H, eps):
    BL = B * L

    # ---- byte embedding: one-hot (BL,256) @ table (256,D), all in VMEM ----
    ids = ids_ref[...]                                              # (BL, 1) i32
    cols = jax.lax.broadcasted_iota(jnp.int32, (BL, 256), 1)
    onehot = (cols == ids).astype(jnp.float32)                      # (BL, 256)
    e = jnp.dot(onehot, tab_ref[...],
                preferred_element_type=jnp.float32)                 # (BL, D)

    # ---- Q/K/V projections batched over B*L rows; 1/sqrt(D) folded into q ----
    q = (jnp.dot(e, wq_ref[...], preferred_element_type=jnp.float32)
         + bq_ref[...]) * (1.0 / math.sqrt(D))
    k = jnp.dot(e, wk_ref[...], preferred_element_type=jnp.float32) + bk_ref[...]
    v = jnp.dot(e, wv_ref[...], preferred_element_type=jnp.float32) + bv_ref[...]

    # ---- attention, unrolled over the (tiny) batch; contract last dims ----
    ctx_rows = []
    mean_rows = []
    for b in range(B):
        lo = b * L
        q_b = q[lo:lo + L, :]                                       # (L, D)
        k_b = k[lo:lo + L, :]
        v_b = v[lo:lo + L, :]
        scores = jax.lax.dot_general(                               # q @ k^T, no XLU transpose
            q_b, k_b, dimension_numbers=(((1,), (1,)), ((), ())),
            preferred_element_type=jnp.float32)                     # (L, L)
        m = jnp.max(scores, axis=-1, keepdims=True)
        p = jnp.exp(scores - m)
        denom = jnp.sum(p, axis=-1, keepdims=True)
        attn = p * pl.reciprocal(denom, approx=True)                # (L, L)
        ctx_rows.append(jnp.dot(attn, v_b,
                                preferred_element_type=jnp.float32))  # (L, D)
        mean_rows.append(jnp.mean(attn, axis=0, keepdims=True))     # (1, L) mean over queries
    context = jnp.concatenate(ctx_rows, axis=0)                     # (BL, D)
    attn_mean_ref[...] = jnp.concatenate(mean_rows, axis=0)         # (B, L)

    # ---- output projection + residual + LayerNorm (row-wise over B*L rows) ----
    attended = jnp.dot(context, wo_ref[...],
                       preferred_element_type=jnp.float32) + bo_ref[...]
    y = attended + e
    mu = jnp.mean(y, axis=-1, keepdims=True)
    var = jnp.mean((y - mu) * (y - mu), axis=-1, keepdims=True)
    normed = (y - mu) * jax.lax.rsqrt(var + eps) * gamma_ref[...] + beta_ref[...]

    # ---- classifier: Flatten(L,D) + Linear realized as sum over L of
    #      (B, D) @ (D, H) blocks (avoids an in-kernel (BL,D)->(B,L*D) reshape) ----
    acc = jnp.zeros((B, H), jnp.float32)
    for l in range(L):
        n_l = jnp.concatenate(
            [normed[b * L + l: b * L + l + 1, :] for b in range(B)], axis=0)  # (B, D)
        acc = acc + jnp.dot(n_l, w1_ref[l * D:(l + 1) * D, :],
                            preferred_element_type=jnp.float32)
    h = acc + b1_ref[...]                                           # (B, H)
    g = 0.5 * h * (1.0 + jax.lax.erf(h * (1.0 / math.sqrt(2.0))))   # exact GELU
    out_ref[...] = jnp.dot(g, w2_ref[...],
                           preferred_element_type=jnp.float32) + b2_ref[...]


# ----------------------------------------------------------------------------
# Wrapper: one pallas_call, everything whole-array resident in VMEM
# ----------------------------------------------------------------------------
def model_forward(x, pos, params, *, d_dim, num_classes):
    # pos is accepted (as in the PyTorch forward) but never used there.
    del pos
    B, L = x.shape
    D = d_dim
    H = params["w1"].shape[1]
    C = num_classes
    ids = x.reshape(B * L, 1).astype(jnp.int32)

    kern = functools.partial(fused_model_kernel, B=B, L=L, D=D, H=H, eps=1e-5)
    vmem = lambda: pl.BlockSpec(memory_space=pltpu.MemorySpace.VMEM)

    out, attn_mean = pl.pallas_call(
        kern,
        out_shape=(jax.ShapeDtypeStruct((B, C), jnp.float32),
                   jax.ShapeDtypeStruct((B, L), jnp.float32)),
        in_specs=[vmem() for _ in range(16)],
        out_specs=(vmem(), vmem()),
    )(ids, params["byte_emb"],
      params["wq"], params["bq"], params["wk"], params["bk"],
      params["wv"], params["bv"], params["wo"], params["bo"],
      params["ln_gamma"], params["ln_beta"],
      params["w1"], params["b1"], params["w2"], params["b2"])
    return out, attn_mean


# ----------------------------------------------------------------------------
# Parameter init + pure-JAX reference check
# ----------------------------------------------------------------------------
def init_params(key, *, d_dim, max_byte_len, hidden_size, num_classes):
    ks = jax.random.split(key, 12)
    n = lambda k, s, scale=0.02: (scale * jax.random.normal(k, s)).astype(jnp.float32)
    D = d_dim
    return {
        "byte_emb": n(ks[0], (256, D), 1.0),
        "pos_emb": n(ks[1], (50, D), 1.0),          # unused in forward (matches torch)
        "wq": n(ks[2], (D, D)), "bq": n(ks[3], (1, D)),
        "wk": n(ks[4], (D, D)), "bk": n(ks[5], (1, D)),
        "wv": n(ks[6], (D, D)), "bv": n(ks[7], (1, D)),
        "wo": n(ks[8], (D, D)), "bo": n(ks[9], (1, D)),
        "ln_gamma": jnp.ones((1, D), jnp.float32),
        "ln_beta": jnp.zeros((1, D), jnp.float32),
        "w1": n(ks[10], (max_byte_len * D, hidden_size)),
        "b1": jnp.zeros((1, hidden_size), jnp.float32),
        "w2": n(ks[11], (hidden_size, num_classes)),
        "b2": jnp.zeros((1, num_classes), jnp.float32),
    }


def reference_forward(x, params, *, d_dim):
    emb = params["byte_emb"][x]
    q = emb @ params["wq"] + params["bq"]
    k = emb @ params["wk"] + params["bk"]
    v = emb @ params["wv"] + params["bv"]
    scores = jnp.einsum("bqd,bkd->bqk", q, k) / math.sqrt(d_dim)
    attn = jax.nn.softmax(scores, axis=-1)
    ctx = jnp.einsum("bqk,bkd->bqd", attn, v)
    attended = ctx @ params["wo"] + params["bo"]
    y = attended + emb
    mu = y.mean(-1, keepdims=True)
    var = ((y - mu) ** 2).mean(-1, keepdims=True)
    normed = (y - mu) * jax.lax.rsqrt(var + 1e-5) * params["ln_gamma"] + params["ln_beta"]
    flat = normed.reshape(normed.shape[0], -1)
    h = flat @ params["w1"] + params["b1"]
    g = 0.5 * h * (1.0 + jax.lax.erf(h / math.sqrt(2.0)))
    out = g @ params["w2"] + params["b2"]
    return out, attn.mean(axis=-2)


if __name__ == "__main__":
    B, L, D = 2, 8, 128          # batch, max_byte_len, d_dim
    HIDDEN, NUM_CLASSES = 128, 8

    key = jax.random.PRNGKey(0)
    kx, kp = jax.random.split(key)
    x = jax.random.randint(kx, (B, L), 0, 256, dtype=jnp.int32)
    pos = jnp.broadcast_to(jnp.arange(L, dtype=jnp.int32), (B, L))

    params = init_params(kp, d_dim=D, max_byte_len=L,
                         hidden_size=HIDDEN, num_classes=NUM_CLASSES)

    out, attn_scores = model_forward(x, pos, params, d_dim=D,
                                     num_classes=NUM_CLASSES)
    out = jax.block_until_ready(out)
    attn_scores = jax.block_until_ready(attn_scores)

    ref_out, ref_attn = reference_forward(x, params, d_dim=D)
    assert out.shape == (B, NUM_CLASSES) and attn_scores.shape == (B, L)
    # tolerances loosened slightly vs. the f32 reference because the softmax
    # normalization uses the approximate EUP reciprocal (pl.reciprocal approx=True)
    assert jnp.allclose(out, ref_out, rtol=5e-3, atol=5e-4)
    assert jnp.allclose(attn_scores, ref_attn, rtol=5e-3, atol=5e-4)

    print("KERNEL_OK")
</pallas_src>

<mosaic_0001>
module attributes {stable_mosaic.version = 11 : i64} {
  func.func @fused_model_kernel(%arg0: memref<16x1xi32, #tpu.memory_space<vmem>>, %arg1: memref<256x128xf32, #tpu.memory_space<vmem>>, %arg2: memref<128x128xf32, #tpu.memory_space<vmem>>, %arg3: memref<1x128xf32, #tpu.memory_space<vmem>>, %arg4: memref<128x128xf32, #tpu.memory_space<vmem>>, %arg5: memref<1x128xf32, #tpu.memory_space<vmem>>, %arg6: memref<128x128xf32, #tpu.memory_space<vmem>>, %arg7: memref<1x128xf32, #tpu.memory_space<vmem>>, %arg8: memref<128x128xf32, #tpu.memory_space<vmem>>, %arg9: memref<1x128xf32, #tpu.memory_space<vmem>>, %arg10: memref<1x128xf32, #tpu.memory_space<vmem>>, %arg11: memref<1x128xf32, #tpu.memory_space<vmem>>, %arg12: memref<1024x128xf32, #tpu.memory_space<vmem>>, %arg13: memref<1x128xf32, #tpu.memory_space<vmem>>, %arg14: memref<128x8xf32, #tpu.memory_space<vmem>>, %arg15: memref<1x8xf32, #tpu.memory_space<vmem>>, %arg16: memref<2x8xf32, #tpu.memory_space<vmem>>, %arg17: memref<2x8xf32, #tpu.memory_space<vmem>>) attributes {dimension_semantics = [], scalar_prefetch = 0 : i64, scratch_operands = 0 : i64, tpu.core_type = #tpu.core_type<tc>} {
    %c0 = arith.constant 0 : index
    %c0_0 = arith.constant 0 : index
    %0 = vector.load %arg0[%c0, %c0_0] : memref<16x1xi32, #tpu.memory_space<vmem>>, vector<16x1xi32>
    %1 = tpu.iota {dimensions = array<i32: 1>} : vector<16x256xi32>
    %2 = vector.broadcast %0 : vector<16x1xi32> to vector<16x256xi32>
    %3 = arith.cmpi eq, %1, %2 : vector<16x256xi32>
    %4 = arith.extui %3 : vector<16x256xi1> to vector<16x256xi32>
    %5 = arith.sitofp %4 : vector<16x256xi32> to vector<16x256xf32>
    %c0_1 = arith.constant 0 : index
    %c0_2 = arith.constant 0 : index
    %6 = vector.load %arg1[%c0_1, %c0_2] : memref<256x128xf32, #tpu.memory_space<vmem>>, vector<256x128xf32>
    %cst = arith.constant dense<0.000000e+00> : vector<16x128xf32>
    %7 = tpu.matmul %5, %6, %cst {dimension_numbers = #tpu.dot_dimension_numbers<[1], [0], [0], [1], [0, 0, 1, 1], [], []>} : vector<16x256xf32>, vector<256x128xf32>, vector<16x128xf32> -> vector<16x128xf32>
    %c0_3 = arith.constant 0 : index
    %c0_4 = arith.constant 0 : index
    %8 = vector.load %arg2[%c0_3, %c0_4] : memref<128x128xf32, #tpu.memory_space<vmem>>, vector<128x128xf32>
    %cst_5 = arith.constant dense<0.000000e+00> : vector<16x128xf32>
    %9 = tpu.matmul %7, %8, %cst_5 {dimension_numbers = #tpu.dot_dimension_numbers<[1], [0], [0], [1], [0, 0, 1, 1], [], []>} : vector<16x128xf32>, vector<128x128xf32>, vector<16x128xf32> -> vector<16x128xf32>
    %c0_6 = arith.constant 0 : index
    %c0_7 = arith.constant 0 : index
    %10 = vector.load %arg3[%c0_6, %c0_7] : memref<1x128xf32, #tpu.memory_space<vmem>>, vector<1x128xf32>
    %11 = vector.broadcast %10 : vector<1x128xf32> to vector<16x128xf32>
    %12 = arith.addf %9, %11 : vector<16x128xf32>
    %cst_8 = arith.constant 0.0883883461 : f32
    %13 = vector.broadcast %cst_8 : f32 to vector<16x128xf32>
    %14 = arith.mulf %12, %13 : vector<16x128xf32>
    %c0_9 = arith.constant 0 : index
    %c0_10 = arith.constant 0 : index
    %15 = vector.load %arg4[%c0_9, %c0_10] : memref<128x128xf32, #tpu.memory_space<vmem>>, vector<128x128xf32>
    %cst_11 = arith.constant dense<0.000000e+00> : vector<16x128xf32>
    %16 = tpu.matmul %7, %15, %cst_11 {dimension_numbers = #tpu.dot_dimension_numbers<[1], [0], [0], [1], [0, 0, 1, 1], [], []>} : vector<16x128xf32>, vector<128x128xf32>, vector<16x128xf32> -> vector<16x128xf32>
    %c0_12 = arith.constant 0 : index
    %c0_13 = arith.constant 0 : index
    %17 = vector.load %arg5[%c0_12, %c0_13] : memref<1x128xf32, #tpu.memory_space<vmem>>, vector<1x128xf32>
    %18 = vector.broadcast %17 : vector<1x128xf32> to vector<16x128xf32>
    %19 = arith.addf %16, %18 : vector<16x128xf32>
    %c0_14 = arith.constant 0 : index
    %c0_15 = arith.constant 0 : index
    %20 = vector.load %arg6[%c0_14, %c0_15] : memref<128x128xf32, #tpu.memory_space<vmem>>, vector<128x128xf32>
    %cst_16 = arith.constant dense<0.000000e+00> : vector<16x128xf32>
    %21 = tpu.matmul %7, %20, %cst_16 {dimension_numbers = #tpu.dot_dimension_numbers<[1], [0], [0], [1], [0, 0, 1, 1], [], []>} : vector<16x128xf32>, vector<128x128xf32>, vector<16x128xf32> -> vector<16x128xf32>
    %c0_17 = arith.constant 0 : index
    %c0_18 = arith.constant 0 : index
    %22 = vector.load %arg7[%c0_17, %c0_18] : memref<1x128xf32, #tpu.memory_space<vmem>>, vector<1x128xf32>
    %23 = vector.broadcast %22 : vector<1x128xf32> to vector<16x128xf32>
    %24 = arith.addf %21, %23 : vector<16x128xf32>
    %25 = vector.extract_strided_slice %14 {offsets = [0, 0], sizes = [8, 128], strides = [1, 1]} : vector<16x128xf32> to vector<8x128xf32>
    %26 = vector.extract_strided_slice %19 {offsets = [0, 0], sizes = [8, 128], strides = [1, 1]} : vector<16x128xf32> to vector<8x128xf32>
    %27 = vector.extract_strided_slice %24 {offsets = [0, 0], sizes = [8, 128], strides = [1, 1]} : vector<16x128xf32> to vector<8x128xf32>
    %cst_19 = arith.constant dense<0.000000e+00> : vector<8x8xf32>
    %28 = tpu.matmul %25, %26, %cst_19 {dimension_numbers = #tpu.dot_dimension_numbers<[1], [1], [0], [0], [0, 0, 1, 0], [], []>} : vector<8x128xf32>, vector<8x128xf32>, vector<8x8xf32> -> vector<8x8xf32>
    %cst_20 = arith.constant dense<0xFF800000> : vector<8xf32>
    %29 = vector.multi_reduction <maximumf>, %28, %cst_20 [1] : vector<8x8xf32> to vector<8xf32>
    %30 = vector.shape_cast %29 : vector<8xf32> to vector<8x1xf32>
    %31 = vector.broadcast %30 : vector<8x1xf32> to vector<8x8xf32>
    %32 = arith.subf %28, %31 : vector<8x8xf32>
    %33 = math.exp %32 : vector<8x8xf32>
    %cst_21 = arith.constant dense<0.000000e+00> : vector<8xf32>
    %34 = vector.multi_reduction <add>, %33, %cst_21 [1] : vector<8x8xf32> to vector<8xf32>
    %35 = vector.shape_cast %34 : vector<8xf32> to vector<8x1xf32>
    %36 = tpu.reciprocal %35 {approx = true} : vector<8x1xf32> -> vector<8x1xf32>
    %37 = vector.broadcast %36 : vector<8x1xf32> to vector<8x8xf32>
    %38 = arith.mulf %33, %37 : vector<8x8xf32>
    %cst_22 = arith.constant dense<0.000000e+00> : vector<8x128xf32>
    %39 = tpu.matmul %38, %27, %cst_22 {dimension_numbers = #tpu.dot_dimension_numbers<[1], [0], [0], [1], [0, 0, 1, 1], [], []>} : vector<8x8xf32>, vector<8x128xf32>, vector<8x128xf32> -> vector<8x128xf32>
    %cst_23 = arith.constant dense<0.000000e+00> : vector<8xf32>
    %40 = vector.multi_reduction <add>, %38, %cst_23 [0] : vector<8x8xf32> to vector<8xf32>
    %41 = vector.shape_cast %40 : vector<8xf32> to vector<1x8xf32>
    %cst_24 = arith.constant 8.000000e+00 : f32
    %42 = vector.broadcast %cst_24 : f32 to vector<1x8xf32>
    %43 = arith.divf %41, %42 : vector<1x8xf32>
    %44 = vector.extract_strided_slice %14 {offsets = [8, 0], sizes = [8, 128], strides = [1, 1]} : vector<16x128xf32> to vector<8x128xf32>
    %45 = vector.extract_strided_slice %19 {offsets = [8, 0], sizes = [8, 128], strides = [1, 1]} : vector<16x128xf32> to vector<8x128xf32>
    %46 = vector.extract_strided_slice %24 {offsets = [8, 0], sizes = [8, 128], strides = [1, 1]} : vector<16x128xf32> to vector<8x128xf32>
    %cst_25 = arith.constant dense<0.000000e+00> : vector<8x8xf32>
    %47 = tpu.matmul %44, %45, %cst_25 {dimension_numbers = #tpu.dot_dimension_numbers<[1], [1], [0], [0], [0, 0, 1, 0], [], []>} : vector<8x128xf32>, vector<8x128xf32>, vector<8x8xf32> -> vector<8x8xf32>
    %cst_26 = arith.constant dense<0xFF800000> : vector<8xf32>
    %48 = vector.multi_reduction <maximumf>, %47, %cst_26 [1] : vector<8x8xf32> to vector<8xf32>
    %49 = vector.shape_cast %48 : vector<8xf32> to vector<8x1xf32>
    %50 = vector.broadcast %49 : vector<8x1xf32> to vector<8x8xf32>
    %51 = arith.subf %47, %50 : vector<8x8xf32>
    %52 = math.exp %51 : vector<8x8xf32>
    %cst_27 = arith.constant dense<0.000000e+00> : vector<8xf32>
    %53 = vector.multi_reduction <add>, %52, %cst_27 [1] : vector<8x8xf32> to vector<8xf32>
    %54 = vector.shape_cast %53 : vector<8xf32> to vector<8x1xf32>
    %55 = tpu.reciprocal %54 {approx = true} : vector<8x1xf32> -> vector<8x1xf32>
    %56 = vector.broadcast %55 : vector<8x1xf32> to vector<8x8xf32>
    %57 = arith.mulf %52, %56 : vector<8x8xf32>
    %cst_28 = arith.constant dense<0.000000e+00> : vector<8x128xf32>
    %58 = tpu.matmul %57, %46, %cst_28 {dimension_numbers = #tpu.dot_dimension_numbers<[1], [0], [0], [1], [0, 0, 1, 1], [], []>} : vector<8x8xf32>, vector<8x128xf32>, vector<8x128xf32> -> vector<8x128xf32>
    %cst_29 = arith.constant dense<0.000000e+00> : vector<8xf32>
    %59 = vector.multi_reduction <add>, %57, %cst_29 [0] : vector<8x8xf32> to vector<8xf32>
    %60 = vector.shape_cast %59 : vector<8xf32> to vector<1x8xf32>
    %cst_30 = arith.constant 8.000000e+00 : f32
    %61 = vector.broadcast %cst_30 : f32 to vector<1x8xf32>
    %62 = arith.divf %60, %61 : vector<1x8xf32>
    %63 = tpu.concatenate %39, %58 in 0 : vector<8x128xf32>, vector<8x128xf32> -> vector<16x128xf32>
    %64 = tpu.concatenate %43, %62 in 0 : vector<1x8xf32>, vector<1x8xf32> -> vector<2x8xf32>
    %c0_31 = arith.constant 0 : index
    %c0_32 = arith.constant 0 : index
    %65 = vector.load %arg17[%c0_31, %c0_32] : memref<2x8xf32, #tpu.memory_space<vmem>>, vector<2x8xf32>
    tpu.vector_store %arg17[%c0_31, %c0_32], %64 {strides = array<i32>} : memref<2x8xf32, #tpu.memory_space<vmem>>, vector<2x8xf32>,
    %c0_33 = arith.constant 0 : index
    %c0_34 = arith.constant 0 : index
    %66 = vector.load %arg8[%c0_33, %c0_34] : memref<128x128xf32, #tpu.memory_space<vmem>>, vector<128x128xf32>
    %cst_35 = arith.constant dense<0.000000e+00> : vector<16x128xf32>
    %67 = tpu.matmul %63, %66, %cst_35 {dimension_numbers = #tpu.dot_dimension_numbers<[1], [0], [0], [1], [0, 0, 1, 1], [], []>} : vector<16x128xf32>, vector<128x128xf32>, vector<16x128xf32> -> vector<16x128xf32>
    %c0_36 = arith.constant 0 : index
    %c0_37 = arith.constant 0 : index
    %68 = vector.load %arg9[%c0_36, %c0_37] : memref<1x128xf32, #tpu.memory_space<vmem>>, vector<1x128xf32>
    %69 = vector.broadcast %68 : vector<1x128xf32> to vector<16x128xf32>
    %70 = arith.addf %67, %69 : vector<16x128xf32>
    %71 = arith.addf %70, %7 : vector<16x128xf32>
    %cst_38 = arith.constant dense<0.000000e+00> : vector<16xf32>
    %72 = vector.multi_reduction <add>, %71, %cst_38 [1] : vector<16x128xf32> to vector<16xf32>
    %73 = vector.shape_cast %72 : vector<16xf32> to vector<16x1xf32>
    %cst_39 = arith.constant 1.280000e+02 : f32
    %74 = vector.broadcast %cst_39 : f32 to vector<16x1xf32>
    %75 = arith.divf %73, %74 : vector<16x1xf32>
    %76 = vector.broadcast %75 : vector<16x1xf32> to vector<16x128xf32>
    %77 = arith.subf %71, %76 : vector<16x128xf32>
    %78 = vector.broadcast %75 : vector<16x1xf32> to vector<16x128xf32>
    %79 = arith.subf %71, %78 : vector<16x128xf32>
    %80 = arith.mulf %77, %79 : vector<16x128xf32>
    %cst_40 = arith.constant dense<0.000000e+00> : vector<16xf32>
    %81 = vector.multi_reduction <add>, %80, %cst_40 [1] : vector<16x128xf32> to vector<16xf32>
    %82 = vector.shape_cast %81 : vector<16xf32> to vector<16x1xf32>
    %cst_41 = arith.constant 1.280000e+02 : f32
    %83 = vector.broadcast %cst_41 : f32 to vector<16x1xf32>
    %84 = arith.divf %82, %83 : vector<16x1xf32>
    %85 = vector.broadcast %75 : vector<16x1xf32> to vector<16x128xf32>
    %86 = arith.subf %71, %85 : vector<16x128xf32>
    %cst_42 = arith.constant 9.99999974E-6 : f32
    %87 = vector.broadcast %cst_42 : f32 to vector<16x1xf32>
    %88 = arith.addf %84, %87 : vector<16x1xf32>
    %89 = math.rsqrt %88 : vector<16x1xf32>
    %90 = vector.broadcast %89 : vector<16x1xf32> to vector<16x128xf32>
    %91 = arith.mulf %86, %90 : vector<16x128xf32>
    %c0_43 = arith.constant 0 : index
    %c0_44 = arith.constant 0 : index
    %92 = vector.load %arg10[%c0_43, %c0_44] : memref<1x128xf32, #tpu.memory_space<vmem>>, vector<1x128xf32>
    %93 = vector.broadcast %92 : vector<1x128xf32> to vector<16x128xf32>
    %94 = arith.mulf %91, %93 : vector<16x128xf32>
    %c0_45 = arith.constant 0 : index
    %c0_46 = arith.constant 0 : index
    %95 = vector.load %arg11[%c0_45, %c0_46] : memref<1x128xf32, #tpu.memory_space<vmem>>, vector<1x128xf32>
    %96 = vector.broadcast %95 : vector<1x128xf32> to vector<16x128xf32>
    %97 = arith.addf %94, %96 : vector<16x128xf32>
    %cst_47 = arith.constant 0.000000e+00 : f32
    %98 = vector.broadcast %cst_47 : f32 to vector<2x128xf32>
    %99 = vector.extract_strided_slice %97 {offsets = [0, 0], sizes = [1, 128], strides = [1, 1]} : vector<16x128xf32> to vector<1x128xf32>
    %100 = vector.extract_strided_slice %97 {offsets = [8, 0], sizes = [1, 128], strides = [1, 1]} : vector<16x128xf32> to vector<1x128xf32>
    %101 = tpu.concatenate %99, %100 in 0 : vector<1x128xf32>, vector<1x128xf32> -> vector<2x128xf32>
    %c0_48 = arith.constant 0 : index
    %c0_49 = arith.constant 0 : index
    %102 = vector.load %arg12[%c0_48, %c0_49] : memref<1024x128xf32, #tpu.memory_space<vmem>>, vector<128x128xf32>
    %cst_50 = arith.constant dense<0.000000e+00> : vector<2x128xf32>
    %103 = tpu.matmul %101, %102, %cst_50 {dimension_numbers = #tpu.dot_dimension_numbers<[1], [0], [0], [1], [0, 0, 1, 1], [], []>} : vector<2x128xf32>, vector<128x128xf32>, vector<2x128xf32> -> vector<2x128xf32>
    %104 = arith.addf %98, %103 : vector<2x128xf32>
    %105 = vector.extract_strided_slice %97 {offsets = [1, 0], sizes = [1, 128], strides = [1, 1]} : vector<16x128xf32> to vector<1x128xf32>
    %106 = vector.extract_strided_slice %97 {offsets = [9, 0], sizes = [1, 128], strides = [1, 1]} : vector<16x128xf32> to vector<1x128xf32>
    %107 = tpu.concatenate %105, %106 in 0 : vector<1x128xf32>, vector<1x128xf32> -> vector<2x128xf32>
    %c128 = arith.constant 128 : index
    %c0_51 = arith.constant 0 : index
    %108 = vector.load %arg12[%c128, %c0_51] : memref<1024x128xf32, #tpu.memory_space<vmem>>, vector<128x128xf32>
    %cst_52 = arith.constant dense<0.000000e+00> : vector<2x128xf32>
    %109 = tpu.matmul %107, %108, %cst_52 {dimension_numbers = #tpu.dot_dimension_numbers<[1], [0], [0], [1], [0, 0, 1, 1], [], []>} : vector<2x128xf32>, vector<128x128xf32>, vector<2x128xf32> -> vector<2x128xf32>
    %110 = arith.addf %104, %109 : vector<2x128xf32>
    %111 = vector.extract_strided_slice %97 {offsets = [2, 0], sizes = [1, 128], strides = [1, 1]} : vector<16x128xf32> to vector<1x128xf32>
    %112 = vector.extract_strided_slice %97 {offsets = [10, 0], sizes = [1, 128], strides = [1, 1]} : vector<16x128xf32> to vector<1x128xf32>
    %113 = tpu.concatenate %111, %112 in 0 : vector<1x128xf32>, vector<1x128xf32> -> vector<2x128xf32>
    %c256 = arith.constant 256 : index
    %c0_53 = arith.constant 0 : index
    %114 = vector.load %arg12[%c256, %c0_53] : memref<1024x128xf32, #tpu.memory_space<vmem>>, vector<128x128xf32>
    %cst_54 = arith.constant dense<0.000000e+00> : vector<2x128xf32>
    %115 = tpu.matmul %113, %114, %cst_54 {dimension_numbers = #tpu.dot_dimension_numbers<[1], [0], [0], [1], [0, 0, 1, 1], [], []>} : vector<2x128xf32>, vector<128x128xf32>, vector<2x128xf32> -> vector<2x128xf32>
    %116 = arith.addf %110, %115 : vector<2x128xf32>
    %117 = vector.extract_strided_slice %97 {offsets = [3, 0], sizes = [1, 128], strides = [1, 1]} : vector<16x128xf32> to vector<1x128xf32>
    %118 = vector.extract_strided_slice %97 {offsets = [11, 0], sizes = [1, 128], strides = [1, 1]} : vector<16x128xf32> to vector<1x128xf32>
    %119 = tpu.concatenate %117, %118 in 0 : vector<1x128xf32>, vector<1x128xf32> -> vector<2x128xf32>
    %c384 = arith.constant 384 : index
    %c0_55 = arith.constant 0 : index
    %120 = vector.load %arg12[%c384, %c0_55] : memref<1024x128xf32, #tpu.memory_space<vmem>>, vector<128x128xf32>
    %cst_56 = arith.constant dense<0.000000e+00> : vector<2x128xf32>
    %121 = tpu.matmul %119, %120, %cst_56 {dimension_numbers = #tpu.dot_dimension_numbers<[1], [0], [0], [1], [0, 0, 1, 1], [], []>} : vector<2x128xf32>, vector<128x128xf32>, vector<2x128xf32> -> vector<2x128xf32>
    %122 = arith.addf %116, %121 : vector<2x128xf32>
    %123 = vector.extract_strided_slice %97 {offsets = [4, 0], sizes = [1, 128], strides = [1, 1]} : vector<16x128xf32> to vector<1x128xf32>
    %124 = vector.extract_strided_slice %97 {offsets = [12, 0], sizes = [1, 128], strides = [1, 1]} : vector<16x128xf32> to vector<1x128xf32>
    %125 = tpu.concatenate %123, %124 in 0 : vector<1x128xf32>, vector<1x128xf32> -> vector<2x128xf32>
    %c512 = arith.constant 512 : index
    %c0_57 = arith.constant 0 : index
    %126 = vector.load %arg12[%c512, %c0_57] : memref<1024x128xf32, #tpu.memory_space<vmem>>, vector<128x128xf32>
    %cst_58 = arith.constant dense<0.000000e+00> : vector<2x128xf32>
    %127 = tpu.matmul %125, %126, %cst_58 {dimension_numbers = #tpu.dot_dimension_numbers<[1], [0], [0], [1], [0, 0, 1, 1], [], []>} : vector<2x128xf32>, vector<128x128xf32>, vector<2x128xf32> -> vector<2x128xf32>
    %128 = arith.addf %122, %127 : vector<2x128xf32>
    %129 = vector.extract_strided_slice %97 {offsets = [5, 0], sizes = [1, 128], strides = [1, 1]} : vector<16x128xf32> to vector<1x128xf32>
    %130 = vector.extract_strided_slice %97 {offsets = [13, 0], sizes = [1, 128], strides = [1, 1]} : vector<16x128xf32> to vector<1x128xf32>
    %131 = tpu.concatenate %129, %130 in 0 : vector<1x128xf32>, vector<1x128xf32> -> vector<2x128xf32>
    %c640 = arith.constant 640 : index
    %c0_59 = arith.constant 0 : index
    %132 = vector.load %arg12[%c640, %c0_59] : memref<1024x128xf32, #tpu.memory_space<vmem>>, vector<128x128xf32>
    %cst_60 = arith.constant dense<0.000000e+00> : vector<2x128xf32>
    %133 = tpu.matmul %131, %132, %cst_60 {dimension_numbers = #tpu.dot_dimension_numbers<[1], [0], [0], [1], [0, 0, 1, 1], [], []>} : vector<2x128xf32>, vector<128x128xf32>, vector<2x128xf32> -> vector<2x128xf32>
    %134 = arith.addf %128, %133 : vector<2x128xf32>
    %135 = vector.extract_strided_slice %97 {offsets = [6, 0], sizes = [1, 128], strides = [1, 1]} : vector<16x128xf32> to vector<1x128xf32>
    %136 = vector.extract_strided_slice %97 {offsets = [14, 0], sizes = [1, 128], strides = [1, 1]} : vector<16x128xf32> to vector<1x128xf32>
    %137 = tpu.concatenate %135, %136 in 0 : vector<1x128xf32>, vector<1x128xf32> -> vector<2x128xf32>
    %c768 = arith.constant 768 : index
    %c0_61 = arith.constant 0 : index
    %138 = vector.load %arg12[%c768, %c0_61] : memref<1024x128xf32, #tpu.memory_space<vmem>>, vector<128x128xf32>
    %cst_62 = arith.constant dense<0.000000e+00> : vector<2x128xf32>
    %139 = tpu.matmul %137, %138, %cst_62 {dimension_numbers = #tpu.dot_dimension_numbers<[1], [0], [0], [1], [0, 0, 1, 1], [], []>} : vector<2x128xf32>, vector<128x128xf32>, vector<2x128xf32> -> vector<2x128xf32>
    %140 = arith.addf %134, %139 : vector<2x128xf32>
    %141 = vector.extract_strided_slice %97 {offsets = [7, 0], sizes = [1, 128], strides = [1, 1]} : vector<16x128xf32> to vector<1x128xf32>
    %142 = vector.extract_strided_slice %97 {offsets = [15, 0], sizes = [1, 128], strides = [1, 1]} : vector<16x128xf32> to vector<1x128xf32>
    %143 = tpu.concatenate %141, %142 in 0 : vector<1x128xf32>, vector<1x128xf32> -> vector<2x128xf32>
    %c896 = arith.constant 896 : index
    %c0_63 = arith.constant 0 : index
    %144 = vector.load %arg12[%c896, %c0_63] : memref<1024x128xf32, #tpu.memory_space<vmem>>, vector<128x128xf32>
    %cst_64 = arith.constant dense<0.000000e+00> : vector<2x128xf32>
    %145 = tpu.matmul %143, %144, %cst_64 {dimension_numbers = #tpu.dot_dimension_numbers<[1], [0], [0], [1], [0, 0, 1, 1], [], []>} : vector<2x128xf32>, vector<128x128xf32>, vector<2x128xf32> -> vector<2x128xf32>
    %146 = arith.addf %140, %145 : vector<2x128xf32>
    %c0_65 = arith.constant 0 : index
    %c0_66 = arith.constant 0 : index
    %147 = vector.load %arg13[%c0_65, %c0_66] : memref<1x128xf32, #tpu.memory_space<vmem>>, vector<1x128xf32>
    %148 = vector.broadcast %147 : vector<1x128xf32> to vector<2x128xf32>
    %149 = arith.addf %146, %148 : vector<2x128xf32>
    %cst_67 = arith.constant 5.000000e-01 : f32
    %150 = vector.broadcast %cst_67 : f32 to vector<2x128xf32>
    %151 = arith.mulf %150, %149 : vector<2x128xf32>
    %cst_68 = arith.constant 0.707106769 : f32
    %152 = vector.broadcast %cst_68 : f32 to vector<2x128xf32>
    %153 = arith.mulf %149, %152 : vector<2x128xf32>
    %154 = math.erf %153 : vector<2x128xf32>
    %cst_69 = arith.constant 1.000000e+00 : f32
    %155 = vector.broadcast %cst_69 : f32 to vector<2x128xf32>
    %156 = arith.addf %155, %154 : vector<2x128xf32>
    %157 = arith.mulf %151, %156 : vector<2x128xf32>
    %c0_70 = arith.constant 0 : index
    %c0_71 = arith.constant 0 : index
    %158 = vector.load %arg14[%c0_70, %c0_71] : memref<128x8xf32, #tpu.memory_space<vmem>>, vector<128x8xf32>
    %cst_72 = arith.constant dense<0.000000e+00> : vector<2x8xf32>
    %159 = tpu.matmul %157, %158, %cst_72 {dimension_numbers = #tpu.dot_dimension_numbers<[1], [0], [0], [1], [0, 0, 1, 1], [], []>} : vector<2x128xf32>, vector<128x8xf32>, vector<2x8xf32> -> vector<2x8xf32>
    %c0_73 = arith.constant 0 : index
    %c0_74 = arith.constant 0 : index
    %160 = vector.load %arg15[%c0_73, %c0_74] : memref<1x8xf32, #tpu.memory_space<vmem>>, vector<1x8xf32>
    %161 = vector.broadcast %160 : vector<1x8xf32> to vector<2x8xf32>
    %162 = arith.addf %159, %161 : vector<2x8xf32>
    %c0_75 = arith.constant 0 : index
    %c0_76 = arith.constant 0 : index
    %163 = vector.load %arg16[%c0_75, %c0_76] : memref<2x8xf32, #tpu.memory_space<vmem>>, vector<2x8xf32>
    tpu.vector_store %arg16[%c0_75, %c0_76], %162 {strides = array<i32>} : memref<2x8xf32, #tpu.memory_space<vmem>>, vector<2x8xf32>,
    return
  }
}

</mosaic_0001>

<llo_original>
// kernel: tpu_custom_call.1
$region0: #{tpu_custom_call.1}
  #allocation0 [shape = 'u32[]', space=smem, size = 0x4, offset = 0x4, fixed_abs, tag = 'smem constant byte address 0x4 - core index']
  #allocation1 [shape = 'u32[144,128]{1,0:T(1,128)}', space=vmem, size = 0x12000, scoped, tag = 'internal scratch']
  %s0 = inlined_call_operand.vmem [shape: s32[16,1], index: 0, kind: input, shape index: {}]
  %s1 = inlined_call_operand.hbm [shape: f32[256,128], index: 1, kind: input, shape index: {}]
  %s2 = inlined_call_operand.vmem [shape: f32[128,128], index: 2, kind: input, shape index: {}]
  %s3 = inlined_call_operand.vmem [shape: f32[1,128], index: 3, kind: input, shape index: {}]
  %s4 = inlined_call_operand.hbm [shape: f32[128,128], index: 4, kind: input, shape index: {}]
  %s5 = inlined_call_operand.vmem [shape: f32[1,128], index: 5, kind: input, shape index: {}]
  %s6 = inlined_call_operand.hbm [shape: f32[128,128], index: 6, kind: input, shape index: {}]
  %s7 = inlined_call_operand.vmem [shape: f32[1,128], index: 7, kind: input, shape index: {}]
  %s8 = inlined_call_operand.hbm [shape: f32[128,128], index: 8, kind: input, shape index: {}]
  %s9 = inlined_call_operand.vmem [shape: f32[1,128], index: 9, kind: input, shape index: {}]
  %s10 = inlined_call_operand.vmem [shape: f32[1,128], index: 10, kind: input, shape index: {}]
  %s11 = inlined_call_operand.vmem [shape: f32[1,128], index: 11, kind: input, shape index: {}]
  %s12 = inlined_call_operand.hbm [shape: f32[1024,128], index: 12, kind: input, shape index: {}]
  %s13 = inlined_call_operand.vmem [shape: f32[1,128], index: 13, kind: input, shape index: {}]
  %s14 = inlined_call_operand.vmem [shape: f32[128,8], index: 14, kind: input, shape index: {}]
  %s15 = inlined_call_operand.vmem [shape: f32[1,8], index: 15, kind: input, shape index: {}]
  %s16 = inlined_call_operand.hbm [shape: f32[2,8], index: 16, kind: output, shape index: {0}]
  %s17 = inlined_call_operand.hbm [shape: f32[2,8], index: 17, kind: output, shape index: {1}]
  %18 = xla_tuple %s16, %s17
  %s19 = sld [smem:[#allocation0]]
  $region102: #{tpu_custom_call.1} parent=0
    _
  %s21 = ssub.s32 1, %s19
  %s22 = scalar_select 0, %s21, %s19
  $region1: #{tpu_custom_call.1} parent=0
    #allocation2 [shape = 'u8[131072]{0}', space=vmem, size = 0x20000, scoped, tag = 'input window, operand 1, single buffered']
    #allocation3 [shape = 's32[1]{0}', space=sflag, size = 0x4, scoped, tag = 'scoped memory for tpu_custom_call.1']
    #allocation4 [shape = 's32[1]{0}', space=sflag, size = 0x4, scoped, tag = 'scoped memory for tpu_custom_call.1']
    #allocation5 [shape = 'u8[65536]{0}', space=vmem, size = 0x10000, scoped, tag = 'input window, operand 4, single buffered']
    #allocation6 [shape = 's32[1]{0}', space=sflag, size = 0x4, scoped, tag = 'scoped memory for tpu_custom_call.1']
    #allocation7 [shape = 'u8[65536]{0}', space=vmem, size = 0x10000, scoped, tag = 'input window, operand 6, single buffered']
    #allocation8 [shape = 'u8[65536]{0}', space=vmem, size = 0x10000, scoped, tag = 'input window, operand 8, single buffered']
    #allocation9 [shape = 's32[1]{0}', space=sflag, size = 0x4, scoped, tag = 'scoped memory for tpu_custom_call.1']
    #allocation10 [shape = 'u8[524288]{0}', space=vmem, size = 0x80000, scoped, tag = 'input window, operand 12, single buffered']
    #allocation11 [shape = 'u8[1024]{0}', space=vmem, size = 0x400, scoped, tag = 'output window, operand 0, single buffered']
    #allocation12 [shape = 'u8[1024]{0}', space=vmem, size = 0x400, scoped, tag = 'output window, operand 1, single buffered']
    #allocation13 [shape = 's32[1]{0}', space=sflag, size = 0x4, scoped, tag = 'scoped memory for tpu_custom_call.1']
    %23 = vsyncpa [#allocation3], 0
    %24 = vsyncpa [#allocation6], 0
    %25 = vsyncpa [#allocation9], 0
    %26 = vsyncpa [#allocation4], 0
    %27 = vsyncpa [#allocation13], 0
    // Predicated region
    $region2: #{tpu_custom_call.1} parent=1 // pred_check
      _
    $region3: #{tpu_custom_call.1} parent=1 // pred_check_branch
      %29 = sbr.rel (0) target = $region5
    $region4: #{tpu_custom_call.1} parent=1 // pred_region
      _
    $region5: #{tpu_custom_call.1} parent=1 // pred_fallthru
      _
    // Predicated region
    $region6: #{tpu_custom_call.1} parent=1 // pred_check
      _
    $region7: #{tpu_custom_call.1} parent=1 // pred_check_branch
      %31 = sbr.rel (0) target = $region9
    $region8: #{tpu_custom_call.1} parent=1 // pred_region
      %s33 = ssub.s32 4096, 4096
      %34 = vsyncadd [#allocation3], %s33
      %s35 = sshll.u32 [#allocation2], 4
      %s36 = int_to_ptr.vmem [resolvable:$true] %s35
      %41 = dma.hbm_to_vmem [thread:$0]  %s1, 4096, %s36, [#allocation3], 128, 128, 8
    $region9: #{tpu_custom_call.1} parent=1 // pred_fallthru
      _
    // Predicated region
    $region10: #{tpu_custom_call.1} parent=1 // pred_check
      _
    $region11: #{tpu_custom_call.1} parent=1 // pred_check_branch
      %43 = sbr.rel (0) target = $region13
    $region12: #{tpu_custom_call.1} parent=1 // pred_region
      _
    $region13: #{tpu_custom_call.1} parent=1 // pred_fallthru
      _
    // Predicated region
    $region14: #{tpu_custom_call.1} parent=1 // pred_check
      _
    $region15: #{tpu_custom_call.1} parent=1 // pred_check_branch
      %45 = sbr.rel (0) target = $region17
    $region16: #{tpu_custom_call.1} parent=1 // pred_region
      _
    $region17: #{tpu_custom_call.1} parent=1 // pred_fallthru
      _
    // Predicated region
    $region18: #{tpu_custom_call.1} parent=1 // pred_check
      _
    $region19: #{tpu_custom_call.1} parent=1 // pred_check_branch
      %47 = sbr.rel (0) target = $region21
    $region20: #{tpu_custom_call.1} parent=1 // pred_region
      %s49 = ssub.s32 2048, 2048
      %50 = vsyncadd [#allocation6], %s49
      %s51 = sshll.u32 [#allocation5], 4
      %s52 = int_to_ptr.vmem [resolvable:$true] %s51
      %57 = dma.hbm_to_vmem [thread:$0]  %s4, 2048, %s52, [#allocation6], 128, 128, 8
    $region21: #{tpu_custom_call.1} parent=1 // pred_fallthru
      _
    // Predicated region
    $region22: #{tpu_custom_call.1} parent=1 // pred_check
      _
    $region23: #{tpu_custom_call.1} parent=1 // pred_check_branch
      %59 = sbr.rel (0) target = $region25
    $region24: #{tpu_custom_call.1} parent=1 // pred_region
      _
    $region25: #{tpu_custom_call.1} parent=1 // pred_fallthru
      _
    // Predicated region
    $region26: #{tpu_custom_call.1} parent=1 // pred_check
      _
    $region27: #{tpu_custom_call.1} parent=1 // pred_check_branch
      %61 = sbr.rel (0) target = $region29
    $region28: #{tpu_custom_call.1} parent=1 // pred_region
      %s63 = ssub.s32 2048, 2048
      %64 = vsyncadd [#allocation6], %s63
      %s65 = sshll.u32 [#allocation7], 4
      %s66 = int_to_ptr.vmem [resolvable:$true] %s65
      %71 = dma.hbm_to_vmem [thread:$0]  %s6, 2048, %s66, [#allocation6], 128, 128, 8
    $region29: #{tpu_custom_call.1} parent=1 // pred_fallthru
      _
    // Predicated region
    $region30: #{tpu_custom_call.1} parent=1 // pred_check
      _
    $region31: #{tpu_custom_call.1} parent=1 // pred_check_branch
      %73 = sbr.rel (0) target = $region33
    $region32: #{tpu_custom_call.1} parent=1 // pred_region
      _
    $region33: #{tpu_custom_call.1} parent=1 // pred_fallthru
      _
    // Predicated region
    $region34: #{tpu_custom_call.1} parent=1 // pred_check
      _
    $region35: #{tpu_custom_call.1} parent=1 // pred_check_branch
      %75 = sbr.rel (0) target = $region37
    $region36: #{tpu_custom_call.1} parent=1 // pred_region
      %s77 = ssub.s32 2048, 2048
      %78 = vsyncadd [#allocation9], %s77
      %s79 = sshll.u32 [#allocation8], 4
      %s80 = int_to_ptr.vmem [resolvable:$true] %s79
      %85 = dma.hbm_to_vmem [thread:$0]  %s8, 2048, %s80, [#allocation9], 128, 128, 8
    $region37: #{tpu_custom_call.1} parent=1 // pred_fallthru
      _
    // Predicated region
    $region38: #{tpu_custom_call.1} parent=1 // pred_check
      _
    $region39: #{tpu_custom_call.1} parent=1 // pred_check_branch
      %87 = sbr.rel (0) target = $region41
    $region40: #{tpu_custom_call.1} parent=1 // pred_region
      _
    $region41: #{tpu_custom_call.1} parent=1 // pred_fallthru
      _
    // Predicated region
    $region42: #{tpu_custom_call.1} parent=1 // pred_check
      _
    $region43: #{tpu_custom_call.1} parent=1 // pred_check_branch
      %89 = sbr.rel (0) target = $region45
    $region44: #{tpu_custom_call.1} parent=1 // pred_region
      _
    $region45: #{tpu_custom_call.1} parent=1 // pred_fallthru
      _
    // Predicated region
    $region46: #{tpu_custom_call.1} parent=1 // pred_check
      _
    $region47: #{tpu_custom_call.1} parent=1 // pred_check_branch
      %91 = sbr.rel (0) target = $region49
    $region48: #{tpu_custom_call.1} parent=1 // pred_region
      _
    $region49: #{tpu_custom_call.1} parent=1 // pred_fallthru
      _
    // Predicated region
    $region50: #{tpu_custom_call.1} parent=1 // pred_check
      _
    $region51: #{tpu_custom_call.1} parent=1 // pred_check_branch
      %93 = sbr.rel (0) target = $region53
    $region52: #{tpu_custom_call.1} parent=1 // pred_region
      %s95 = ssub.s32 16384, 16384
      %96 = vsyncadd [#allocation9], %s95
      %s97 = sshll.u32 [#allocation10], 4
      %s98 = int_to_ptr.vmem [resolvable:$true] %s97
      %103 = dma.hbm_to_vmem [thread:$0]  %s12, 16384, %s98, [#allocation9], 128, 128, 8
    $region53: #{tpu_custom_call.1} parent=1 // pred_fallthru
      _
    // Predicated region
    $region54: #{tpu_custom_call.1} parent=1 // pred_check
      _
    $region55: #{tpu_custom_call.1} parent=1 // pred_check_branch
      %105 = sbr.rel (0) target = $region57
    $region56: #{tpu_custom_call.1} parent=1 // pred_region
      _
    $region57: #{tpu_custom_call.1} parent=1 // pred_fallthru
      _
    // Predicated region
    $region58: #{tpu_custom_call.1} parent=1 // pred_check
      _
    $region59: #{tpu_custom_call.1} parent=1 // pred_check_branch
      %107 = sbr.rel (0) target = $region61
    $region60: #{tpu_custom_call.1} parent=1 // pred_region
      _
    $region61: #{tpu_custom_call.1} parent=1 // pred_fallthru
      _
    // Predicated region
    $region62: #{tpu_custom_call.1} parent=1 // pred_check
      _
    $region63: #{tpu_custom_call.1} parent=1 // pred_check_branch
      %109 = sbr.rel (0) target = $region65
    $region64: #{tpu_custom_call.1} parent=1 // pred_region
      _
    $region65: #{tpu_custom_call.1} parent=1 // pred_fallthru
      _
    // Predicated region
    $region66: #{tpu_custom_call.1} parent=1 // pred_check
      _
    $region67: #{tpu_custom_call.1} parent=1 // pred_check_branch
      %111 = sbr.rel (0) target = $region69
    $region68: #{tpu_custom_call.1} parent=1 // pred_region
      %112 = dma.done [#allocation3], 4096
    $region69: #{tpu_custom_call.1} parent=1 // pred_fallthru
      _
    // Predicated region
    $region70: #{tpu_custom_call.1} parent=1 // pred_check
      _
    $region71: #{tpu_custom_call.1} parent=1 // pred_check_branch
      %114 = sbr.rel (0) target = $region73
    $region72: #{tpu_custom_call.1} parent=1 // pred_region
      %115 = dma.done [#allocation6], 2048
    $region73: #{tpu_custom_call.1} parent=1 // pred_fallthru
      _
    // Predicated region
    $region74: #{tpu_custom_call.1} parent=1 // pred_check
      _
    $region75: #{tpu_custom_call.1} parent=1 // pred_check_branch
      %117 = sbr.rel (0) target = $region77
    $region76: #{tpu_custom_call.1} parent=1 // pred_region
      %118 = dma.done [#allocation6], 2048
    $region77: #{tpu_custom_call.1} parent=1 // pred_fallthru
      _
    // Predicated region
    $region78: #{tpu_custom_call.1} parent=1 // pred_check
      _
    $region79: #{tpu_custom_call.1} parent=1 // pred_check_branch
      %120 = sbr.rel (0) target = $region81
    $region80: #{tpu_custom_call.1} parent=1 // pred_region
      %121 = dma.done [#allocation9], 2048
    $region81: #{tpu_custom_call.1} parent=1 // pred_fallthru
      _
    // Predicated region
    $region82: #{tpu_custom_call.1} parent=1 // pred_check
      _
    $region83: #{tpu_custom_call.1} parent=1 // pred_check_branch
      %123 = sbr.rel (0) target = $region85
    $region84: #{tpu_custom_call.1} parent=1 // pred_region
      %124 = dma.done [#allocation9], 16384
    $region85: #{tpu_custom_call.1} parent=1 // pred_fallthru
      _
    %v125 = vld [vmem:[%s0] sm:$0xff]
    %v126 = vld [vmem:[%s0 + $0x8] sm:$0xff]
    %v127 = vlaneseq
    %v128 = vand.u32 %v127, 127
    %v129 = vadd.s32 %v128, 128
    %130 = vset.pattern.permute.xlu0 0
    %131 = vperm.xlu0 %130, %v125
    %v132 = vpop.permute.xlu0 %131
    %133 = vset.pattern.permute.xlu0 0
    %134 = vperm.xlu0 %133, %v126
    %v135 = vpop.permute.xlu0 %134
    %vm136 = vcmp.eq.s32.totalorder %v128, %v132
    %vm137 = vcmp.eq.s32.totalorder %v129, %v132
    %vm138 = vcmp.eq.s32.totalorder %v128, %v135
    %vm139 = vcmp.eq.s32.totalorder %v129, %v135
    %v140 = vsel %vm136, 1, 0
    %v141 = vsel %vm137, 1, 0
    %v142 = vsel %vm138, 1, 0
    %v143 = vsel %vm139, 1, 0
    %v144 = vcvt.s32.f32 %v140
    %v145 = vcvt.s32.f32 %v141
    %v146 = vcvt.s32.f32 %v142
    %v147 = vcvt.s32.f32 %v143
    %v148 = vld [vmem:[#allocation2] sm:$0xff]
    %v149 = vld [vmem:[#allocation2 + $0x8] sm:$0xff]
    %v150 = vld [vmem:[#allocation2 + $0x10] sm:$0xff]
    %v151 = vld [vmem:[#allocation2 + $0x18] sm:$0xff]
    %v152 = vld [vmem:[#allocation2 + $0x20] sm:$0xff]
    %v153 = vld [vmem:[#allocation2 + $0x28] sm:$0xff]
    %v154 = vld [vmem:[#allocation2 + $0x30] sm:$0xff]
    %v155 = vld [vmem:[#allocation2 + $0x38] sm:$0xff]
    %v156 = vld [vmem:[#allocation2 + $0x40] sm:$0xff]
    %v157 = vld [vmem:[#allocation2 + $0x48] sm:$0xff]
    %v158 = vld [vmem:[#allocation2 + $0x50] sm:$0xff]
    %v159 = vld [vmem:[#allocation2 + $0x58] sm:$0xff]
    %v160 = vld [vmem:[#allocation2 + $0x60] sm:$0xff]
    %v161 = vld [vmem:[#allocation2 + $0x68] sm:$0xff]
    %v162 = vld [vmem:[#allocation2 + $0x70] sm:$0xff]
    %v163 = vld [vmem:[#allocation2 + $0x78] sm:$0xff]
    %v164 = vld [vmem:[#allocation2 + $0x80] sm:$0xff]
    %v165 = vld [vmem:[#allocation2 + $0x88] sm:$0xff]
    %v166 = vld [vmem:[#allocation2 + $0x90] sm:$0xff]
    %v167 = vld [vmem:[#allocation2 + $0x98] sm:$0xff]
    %v168 = vld [vmem:[#allocation2 + $0xa0] sm:$0xff]
    %v169 = vld [vmem:[#allocation2 + $0xa8] sm:$0xff]
    %v170 = vld [vmem:[#allocation2 + $0xb0] sm:$0xff]
    %v171 = vld [vmem:[#allocation2 + $0xb8] sm:$0xff]
    %v172 = vld [vmem:[#allocation2 + $0xc0] sm:$0xff]
    %v173 = vld [vmem:[#allocation2 + $0xc8] sm:$0xff]
    %v174 = vld [vmem:[#allocation2 + $0xd0] sm:$0xff]
    %v175 = vld [vmem:[#allocation2 + $0xd8] sm:$0xff]
    %v176 = vld [vmem:[#allocation2 + $0xe0] sm:$0xff]
    %v177 = vld [vmem:[#allocation2 + $0xe8] sm:$0xff]
    %v178 = vld [vmem:[#allocation2 + $0xf0] sm:$0xff]
    %v179 = vld [vmem:[#allocation2 + $0xf8] sm:$0xff]
    %180 = vmatprep.subr.mxu0 0.0
    %181 = vmatpush1.msra.mxu0 %v148
    %182 = vmatprep.subr.mxu0 0.0
    %183 = vmatpush1.msra.mxu0 %v149
    %184 = vmatprep.subr.mxu0 0.0
    %185 = vmatpush1.msra.mxu0 %v150
    %186 = vmatprep.subr.mxu0 0.0
    %187 = vmatpush1.msra.mxu0 %v151
    %188 = vmatprep.subr.mxu0 0.0
    %189 = vmatpush1.msra.mxu0 %v152
    %190 = vmatprep.subr.mxu0 0.0
    %191 = vmatpush1.msra.mxu0 %v153
    %192 = vmatprep.subr.mxu0 0.0
    %193 = vmatpush1.msra.mxu0 %v154
    %194 = vmatprep.subr.mxu0 0.0
    %195 = vmatpush1.msra.mxu0 %v155
    %196 = vmatprep.subr.mxu0 0.0
    %197 = vmatpush1.msra.mxu0 %v156
    %198 = vmatprep.subr.mxu0 0.0
    %199 = vmatpush1.msra.mxu0 %v157
    %200 = vmatprep.subr.mxu0 0.0
    %201 = vmatpush1.msra.mxu0 %v158
    %202 = vmatprep.subr.mxu0 0.0
    %203 = vmatpush1.msra.mxu0 %v159
    %204 = vmatprep.subr.mxu0 0.0
    %205 = vmatpush1.msra.mxu0 %v160
    %206 = vmatprep.subr.mxu0 0.0
    %207 = vmatpush1.msra.mxu0 %v161
    %208 = vmatprep.subr.mxu0 0.0
    %209 = vmatpush1.msra.mxu0 %v162
    %210 = vmatprep.subr.mxu0 0.0
    %211 = vmatpush1.msra.mxu0 %v163
    %212 = vmatprep.subr.mxu0 0.0
    %213 = vmatpush1.msra.mxu0 %v164
    %214 = vmatprep.subr.mxu0 0.0
    %215 = vmatpush1.msra.mxu0 %v165
    %216 = vmatprep.subr.mxu0 0.0
    %217 = vmatpush1.msra.mxu0 %v166
    %218 = vmatprep.subr.mxu0 0.0
    %219 = vmatpush1.msra.mxu0 %v167
    %220 = vmatprep.subr.mxu0 0.0
    %221 = vmatpush1.msra.mxu0 %v168
    %222 = vmatprep.subr.mxu0 0.0
    %223 = vmatpush1.msra.mxu0 %v169
    %224 = vmatprep.subr.mxu0 0.0
    %225 = vmatpush1.msra.mxu0 %v170
    %226 = vmatprep.subr.mxu0 0.0
    %227 = vmatpush1.msra.mxu0 %v171
    %228 = vmatprep.subr.mxu0 0.0
    %229 = vmatpush1.msra.mxu0 %v172
    %230 = vmatprep.subr.mxu0 0.0
    %231 = vmatpush1.msra.mxu0 %v173
    %232 = vmatprep.subr.mxu0 0.0
    %233 = vmatpush1.msra.mxu0 %v174
    %234 = vmatprep.subr.mxu0 0.0
    %235 = vmatpush1.msra.mxu0 %v175
    %236 = vmatprep.subr.mxu0 0.0
    %237 = vmatpush1.msra.mxu0 %v176
    %238 = vmatprep.subr.mxu0 0.0
    %239 = vmatpush1.msra.mxu0 %v177
    %240 = vmatprep.subr.mxu0 0.0
    %241 = vmatpush1.msra.mxu0 %v178
    %242 = vmatprep.subr.mxu0 0.0
    %243 = vmatpush1.msra.mxu0 %v179
    %244 = vmatprep.mubr.f32.mxu0 %v145
    %245 = vmatmul.mubr.f32.gmra.mrb[0].mxu0 %v144
    %v246 = vpop.f32.mrb[0].mxu0
    %v247 = vadd.f32 0.0, %v246
    %v248 = vpop.f32.mrb[0].mxu0
    %249 = vmatprep.mubr.f32.mxu0 %v147
    %250 = vmatmul.mubr.f32.gmra.mrb[0].mxu0 %v146
    %v251 = vpop.f32.mrb[0].mxu0
    %v252 = vadd.f32 0.0, %v251
    %v253 = vpop.f32.mrb[0].mxu0
    %254 = vdwg.mxu0
    %v255 = vld [vmem:[%s2] sm:$0xff]
    %v256 = vld [vmem:[%s2 + $0x8] sm:$0xff]
    %v257 = vld [vmem:[%s2 + $0x10] sm:$0xff]
    %v258 = vld [vmem:[%s2 + $0x18] sm:$0xff]
    %v259 = vld [vmem:[%s2 + $0x20] sm:$0xff]
    %v260 = vld [vmem:[%s2 + $0x28] sm:$0xff]
    %v261 = vld [vmem:[%s2 + $0x30] sm:$0xff]
    %v262 = vld [vmem:[%s2 + $0x38] sm:$0xff]
    %v263 = vld [vmem:[%s2 + $0x40] sm:$0xff]
    %v264 = vld [vmem:[%s2 + $0x48] sm:$0xff]
    %v265 = vld [vmem:[%s2 + $0x50] sm:$0xff]
    %v266 = vld [vmem:[%s2 + $0x58] sm:$0xff]
    %v267 = vld [vmem:[%s2 + $0x60] sm:$0xff]
    %v268 = vld [vmem:[%s2 + $0x68] sm:$0xff]
    %v269 = vld [vmem:[%s2 + $0x70] sm:$0xff]
    %v270 = vld [vmem:[%s2 + $0x78] sm:$0xff]
    %v271 = vld [vmem:[%s3] sm:$0x1]
    %v273 = vlaneseq
    %v274 = vshrl.u32 %v273, 7
    %v275 = vsub.s32 0, %v274
    %v276 = vrot.slane %v271, %v275
    %278 = vmatprep.subr.mxu0 0.0
    %279 = vmatpush1.msra.mxu0 %v255
    %280 = vmatprep.subr.mxu0 0.0
    %281 = vmatpush1.msra.mxu0 %v256
    %282 = vmatprep.subr.mxu0 0.0
    %283 = vmatpush1.msra.mxu0 %v257
    %284 = vmatprep.subr.mxu0 0.0
    %285 = vmatpush1.msra.mxu0 %v258
    %286 = vmatprep.subr.mxu0 0.0
    %287 = vmatpush1.msra.mxu0 %v259
    %288 = vmatprep.subr.mxu0 0.0
    %289 = vmatpush1.msra.mxu0 %v260
    %290 = vmatprep.subr.mxu0 0.0
    %291 = vmatpush1.msra.mxu0 %v261
    %292 = vmatprep.subr.mxu0 0.0
    %293 = vmatpush1.msra.mxu0 %v262
    %294 = vmatprep.subr.mxu0 0.0
    %295 = vmatpush1.msra.mxu0 %v263
    %296 = vmatprep.subr.mxu0 0.0
    %297 = vmatpush1.msra.mxu0 %v264
    %298 = vmatprep.subr.mxu0 0.0
    %299 = vmatpush1.msra.mxu0 %v265
    %300 = vmatprep.subr.mxu0 0.0
    %301 = vmatpush1.msra.mxu0 %v266
    %302 = vmatprep.subr.mxu0 0.0
    %303 = vmatpush1.msra.mxu0 %v267
    %304 = vmatprep.subr.mxu0 0.0
    %305 = vmatpush1.msra.mxu0 %v268
    %306 = vmatprep.subr.mxu0 0.0
    %307 = vmatpush1.msra.mxu0 %v269
    %308 = vmatprep.subr.mxu0 0.0
    %309 = vmatpush1.msra.mxu0 %v270
    %310 = vmatprep.subr.mxu0 0.0
    %311 = vmatpush1.msra.mxu0 0.0
    %312 = vmatprep.subr.mxu0 0.0
    %313 = vmatpush1.msra.mxu0 0.0
    %314 = vmatprep.subr.mxu0 0.0
    %315 = vmatpush1.msra.mxu0 0.0
    %316 = vmatprep.subr.mxu0 0.0
    %317 = vmatpush1.msra.mxu0 0.0
    %318 = vmatprep.subr.mxu0 0.0
    %319 = vmatpush1.msra.mxu0 0.0
    %320 = vmatprep.subr.mxu0 0.0
    %321 = vmatpush1.msra.mxu0 0.0
    %322 = vmatprep.subr.mxu0 0.0
    %323 = vmatpush1.msra.mxu0 0.0
    %324 = vmatprep.subr.mxu0 0.0
    %325 = vmatpush1.msra.mxu0 0.0
    %326 = vmatprep.subr.mxu0 0.0
    %327 = vmatpush1.msra.mxu0 0.0
    %328 = vmatprep.subr.mxu0 0.0
    %329 = vmatpush1.msra.mxu0 0.0
    %330 = vmatprep.subr.mxu0 0.0
    %331 = vmatpush1.msra.mxu0 0.0
    %332 = vmatprep.subr.mxu0 0.0
    %333 = vmatpush1.msra.mxu0 0.0
    %334 = vmatprep.subr.mxu0 0.0
    %335 = vmatpush1.msra.mxu0 0.0
    %336 = vmatprep.subr.mxu0 0.0
    %337 = vmatpush1.msra.mxu0 0.0
    %338 = vmatprep.subr.mxu0 0.0
    %339 = vmatpush1.msra.mxu0 0.0
    %340 = vmatprep.subr.mxu0 0.0
    %341 = vmatpush1.msra.mxu0 0.0
    %342 = vmatprep.mubr.f32.mxu0 0.0
    %343 = vmatmul.mubr.f32.gmra.mrb[0].mxu0 %v247
    %v344 = vpop.f32.mrb[0].mxu0
    %v345 = vadd.f32 %v276, %v344
    %v346 = vpop.f32.mrb[0].mxu0
    %347 = vmatprep.mubr.f32.mxu0 0.0
    %348 = vmatmul.mubr.f32.gmra.mrb[0].mxu0 %v252
    %v349 = vpop.f32.mrb[0].mxu0
    %v350 = vadd.f32 %v276, %v349
    %v351 = vpop.f32.mrb[0].mxu0
    %352 = vdwg.mxu0
    %v353 = vmul.f32 %v345, 0.088388346
    %v354 = vmul.f32 %v350, 0.088388346
    %v355 = vld [vmem:[#allocation5] sm:$0xff]
    %v356 = vld [vmem:[#allocation5 + $0x8] sm:$0xff]
    %v357 = vld [vmem:[#allocation5 + $0x10] sm:$0xff]
    %v358 = vld [vmem:[#allocation5 + $0x18] sm:$0xff]
    %v359 = vld [vmem:[#allocation5 + $0x20] sm:$0xff]
    %v360 = vld [vmem:[#allocation5 + $0x28] sm:$0xff]
    %v361 = vld [vmem:[#allocation5 + $0x30] sm:$0xff]
    %v362 = vld [vmem:[#allocation5 + $0x38] sm:$0xff]
    %v363 = vld [vmem:[#allocation5 + $0x40] sm:$0xff]
    %v364 = vld [vmem:[#allocation5 + $0x48] sm:$0xff]
    %v365 = vld [vmem:[#allocation5 + $0x50] sm:$0xff]
    %v366 = vld [vmem:[#allocation5 + $0x58] sm:$0xff]
    %v367 = vld [vmem:[#allocation5 + $0x60] sm:$0xff]
    %v368 = vld [vmem:[#allocation5 + $0x68] sm:$0xff]
    %v369 = vld [vmem:[#allocation5 + $0x70] sm:$0xff]
    %v370 = vld [vmem:[#allocation5 + $0x78] sm:$0xff]
    %v371 = vld [vmem:[%s5] sm:$0x1]
    %v373 = vlaneseq
    %v374 = vshrl.u32 %v373, 7
    %v375 = vsub.s32 0, %v374
    %v376 = vrot.slane %v371, %v375
    %378 = vmatprep.subr.mxu0 0.0
    %379 = vmatpush1.msra.mxu0 %v355
    %380 = vmatprep.subr.mxu0 0.0
    %381 = vmatpush1.msra.mxu0 %v356
    %382 = vmatprep.subr.mxu0 0.0
    %383 = vmatpush1.msra.mxu0 %v357
    %384 = vmatprep.subr.mxu0 0.0
    %385 = vmatpush1.msra.mxu0 %v358
    %386 = vmatprep.subr.mxu0 0.0
    %387 = vmatpush1.msra.mxu0 %v359
    %388 = vmatprep.subr.mxu0 0.0
    %389 = vmatpush1.msra.mxu0 %v360
    %390 = vmatprep.subr.mxu0 0.0
    %391 = vmatpush1.msra.mxu0 %v361
    %392 = vmatprep.subr.mxu0 0.0
    %393 = vmatpush1.msra.mxu0 %v362
    %394 = vmatprep.subr.mxu0 0.0
    %395 = vmatpush1.msra.mxu0 %v363
    %396 = vmatprep.subr.mxu0 0.0
    %397 = vmatpush1.msra.mxu0 %v364
    %398 = vmatprep.subr.mxu0 0.0
    %399 = vmatpush1.msra.mxu0 %v365
    %400 = vmatprep.subr.mxu0 0.0
    %401 = vmatpush1.msra.mxu0 %v366
    %402 = vmatprep.subr.mxu0 0.0
    %403 = vmatpush1.msra.mxu0 %v367
    %404 = vmatprep.subr.mxu0 0.0
    %405 = vmatpush1.msra.mxu0 %v368
    %406 = vmatprep.subr.mxu0 0.0
    %407 = vmatpush1.msra.mxu0 %v369
    %408 = vmatprep.subr.mxu0 0.0
    %409 = vmatpush1.msra.mxu0 %v370
    %410 = vmatprep.subr.mxu0 0.0
    %411 = vmatpush1.msra.mxu0 0.0
    %412 = vmatprep.subr.mxu0 0.0
    %413 = vmatpush1.msra.mxu0 0.0
    %414 = vmatprep.subr.mxu0 0.0
    %415 = vmatpush1.msra.mxu0 0.0
    %416 = vmatprep.subr.mxu0 0.0
    %417 = vmatpush1.msra.mxu0 0.0
    %418 = vmatprep.subr.mxu0 0.0
    %419 = vmatpush1.msra.mxu0 0.0
    %420 = vmatprep.subr.mxu0 0.0
    %421 = vmatpush1.msra.mxu0 0.0
    %422 = vmatprep.subr.mxu0 0.0
    %423 = vmatpush1.msra.mxu0 0.0
    %424 = vmatprep.subr.mxu0 0.0
    %425 = vmatpush1.msra.mxu0 0.0
    %426 = vmatprep.subr.mxu0 0.0
    %427 = vmatpush1.msra.mxu0 0.0
    %428 = vmatprep.subr.mxu0 0.0
    %429 = vmatpush1.msra.mxu0 0.0
    %430 = vmatprep.subr.mxu0 0.0
    %431 = vmatpush1.msra.mxu0 0.0
    %432 = vmatprep.subr.mxu0 0.0
    %433 = vmatpush1.msra.mxu0 0.0
    %434 = vmatprep.subr.mxu0 0.0
    %435 = vmatpush1.msra.mxu0 0.0
    %436 = vmatprep.subr.mxu0 0.0
    %437 = vmatpush1.msra.mxu0 0.0
    %438 = vmatprep.subr.mxu0 0.0
    %439 = vmatpush1.msra.mxu0 0.0
    %440 = vmatprep.subr.mxu0 0.0
    %441 = vmatpush1.msra.mxu0 0.0
    %442 = vmatprep.mubr.f32.mxu0 0.0
    %443 = vmatmul.mubr.f32.gmra.mrb[0].mxu0 %v247
    %v444 = vpop.f32.mrb[0].mxu0
    %v445 = vadd.f32 %v376, %v444
    %v446 = vpop.f32.mrb[0].mxu0
    %447 = vmatprep.mubr.f32.mxu0 0.0
    %448 = vmatmul.mubr.f32.gmra.mrb[0].mxu0 %v252
    %v449 = vpop.f32.mrb[0].mxu0
    %v450 = vadd.f32 %v376, %v449
    %v451 = vpop.f32.mrb[0].mxu0
    %452 = vdwg.mxu0
    %v453 = vld [vmem:[#allocation7] sm:$0xff]
    %v454 = vld [vmem:[#allocation7 + $0x8] sm:$0xff]
    %v455 = vld [vmem:[#allocation7 + $0x10] sm:$0xff]
    %v456 = vld [vmem:[#allocation7 + $0x18] sm:$0xff]
    %v457 = vld [vmem:[#allocation7 + $0x20] sm:$0xff]
    %v458 = vld [vmem:[#allocation7 + $0x28] sm:$0xff]
    %v459 = vld [vmem:[#allocation7 + $0x30] sm:$0xff]
    %v460 = vld [vmem:[#allocation7 + $0x38] sm:$0xff]
    %v461 = vld [vmem:[#allocation7 + $0x40] sm:$0xff]
    %v462 = vld [vmem:[#allocation7 + $0x48] sm:$0xff]
    %v463 = vld [vmem:[#allocation7 + $0x50] sm:$0xff]
    %v464 = vld [vmem:[#allocation7 + $0x58] sm:$0xff]
    %v465 = vld [vmem:[#allocation7 + $0x60] sm:$0xff]
    %v466 = vld [vmem:[#allocation7 + $0x68] sm:$0xff]
    %v467 = vld [vmem:[#allocation7 + $0x70] sm:$0xff]
    %v468 = vld [vmem:[#allocation7 + $0x78] sm:$0xff]
    %v469 = vld [vmem:[%s7] sm:$0x1]
    %v471 = vlaneseq
    %v472 = vshrl.u32 %v471, 7
    %v473 = vsub.s32 0, %v472
    %v474 = vrot.slane %v469, %v473
    %476 = vmatprep.subr.mxu0 0.0
    %477 = vmatpush1.msra.mxu0 %v453
    %478 = vmatprep.subr.mxu0 0.0
    %479 = vmatpush1.msra.mxu0 %v454
    %480 = vmatprep.subr.mxu0 0.0
    %481 = vmatpush1.msra.mxu0 %v455
    %482 = vmatprep.subr.mxu0 0.0
    %483 = vmatpush1.msra.mxu0 %v456
    %484 = vmatprep.subr.mxu0 0.0
    %485 = vmatpush1.msra.mxu0 %v457
    %486 = vmatprep.subr.mxu0 0.0
    %487 = vmatpush1.msra.mxu0 %v458
    %488 = vmatprep.subr.mxu0 0.0
    %489 = vmatpush1.msra.mxu0 %v459
    %490 = vmatprep.subr.mxu0 0.0
    %491 = vmatpush1.msra.mxu0 %v460
    %492 = vmatprep.subr.mxu0 0.0
    %493 = vmatpush1.msra.mxu0 %v461
    %494 = vmatprep.subr.mxu0 0.0
    %495 = vmatpush1.msra.mxu0 %v462
    %496 = vmatprep.subr.mxu0 0.0
    %497 = vmatpush1.msra.mxu0 %v463
    %498 = vmatprep.subr.mxu0 0.0
    %499 = vmatpush1.msra.mxu0 %v464
    %500 = vmatprep.subr.mxu0 0.0
    %501 = vmatpush1.msra.mxu0 %v465
    %502 = vmatprep.subr.mxu0 0.0
    %503 = vmatpush1.msra.mxu0 %v466
    %504 = vmatprep.subr.mxu0 0.0
    %505 = vmatpush1.msra.mxu0 %v467
    %506 = vmatprep.subr.mxu0 0.0
    %507 = vmatpush1.msra.mxu0 %v468
    %508 = vmatprep.subr.mxu0 0.0
    %509 = vmatpush1.msra.mxu0 0.0
    %510 = vmatprep.subr.mxu0 0.0
    %511 = vmatpush1.msra.mxu0 0.0
    %512 = vmatprep.subr.mxu0 0.0
    %513 = vmatpush1.msra.mxu0 0.0
    %514 = vmatprep.subr.mxu0 0.0
    %515 = vmatpush1.msra.mxu0 0.0
    %516 = vmatprep.subr.mxu0 0.0
    %517 = vmatpush1.msra.mxu0 0.0
    %518 = vmatprep.subr.mxu0 0.0
    %519 = vmatpush1.msra.mxu0 0.0
    %520 = vmatprep.subr.mxu0 0.0
    %521 = vmatpush1.msra.mxu0 0.0
    %522 = vmatprep.subr.mxu0 0.0
    %523 = vmatpush1.msra.mxu0 0.0
    %524 = vmatprep.subr.mxu0 0.0
    %525 = vmatpush1.msra.mxu0 0.0
    %526 = vmatprep.subr.mxu0 0.0
    %527 = vmatpush1.msra.mxu0 0.0
    %528 = vmatprep.subr.mxu0 0.0
    %529 = vmatpush1.msra.mxu0 0.0
    %530 = vmatprep.subr.mxu0 0.0
    %531 = vmatpush1.msra.mxu0 0.0
    %532 = vmatprep.subr.mxu0 0.0
    %533 = vmatpush1.msra.mxu0 0.0
    %534 = vmatprep.subr.mxu0 0.0
    %535 = vmatpush1.msra.mxu0 0.0
    %536 = vmatprep.subr.mxu0 0.0
    %537 = vmatpush1.msra.mxu0 0.0
    %538 = vmatprep.subr.mxu0 0.0
    %539 = vmatpush1.msra.mxu0 0.0
    %540 = vmatprep.mubr.f32.mxu0 0.0
    %541 = vmatmul.mubr.f32.gmra.mrb[0].mxu0 %v247
    %v542 = vpop.f32.mrb[0].mxu0
    %v543 = vadd.f32 %v474, %v542
    %v544 = vpop.f32.mrb[0].mxu0
    %545 = vmatprep.mubr.f32.mxu0 0.0
    %546 = vmatmul.mubr.f32.gmra.mrb[0].mxu0 %v252
    %v547 = vpop.f32.mrb[0].mxu0
    %v548 = vadd.f32 %v474, %v547
    %v549 = vpop.f32.mrb[0].mxu0
    %550 = vdwg.mxu0
    %551 = vmatprep.subr.mxu0 0.0
    %552 = vmatpush1.xpose.msra.mxu0 %v445
    %553 = vmatprep.subr.mxu0 0.0
    %554 = vmatpush1.xpose.msra.mxu0 0.0
    %555 = vmatprep.subr.mxu0 0.0
    %556 = vmatpush1.xpose.msra.mxu0 0.0
    %557 = vmatprep.subr.mxu0 0.0
    %558 = vmatpush1.xpose.msra.mxu0 0.0
    %559 = vmatprep.subr.mxu0 0.0
    %560 = vmatpush1.xpose.msra.mxu0 0.0
    %561 = vmatprep.subr.mxu0 0.0
    %562 = vmatpush1.xpose.msra.mxu0 0.0
    %563 = vmatprep.subr.mxu0 0.0
    %564 = vmatpush1.xpose.msra.mxu0 0.0
    %565 = vmatprep.subr.mxu0 0.0
    %566 = vmatpush1.xpose.msra.mxu0 0.0
    %567 = vmatprep.subr.mxu0 0.0
    %568 = vmatpush1.xpose.msra.mxu0 0.0
    %569 = vmatprep.subr.mxu0 0.0
    %570 = vmatpush1.xpose.msra.mxu0 0.0
    %571 = vmatprep.subr.mxu0 0.0
    %572 = vmatpush1.xpose.msra.mxu0 0.0
    %573 = vmatprep.subr.mxu0 0.0
    %574 = vmatpush1.xpose.msra.mxu0 0.0
    %575 = vmatprep.subr.mxu0 0.0
    %576 = vmatpush1.xpose.msra.mxu0 0.0
    %577 = vmatprep.subr.mxu0 0.0
    %578 = vmatpush1.xpose.msra.mxu0 0.0
    %579 = vmatprep.subr.mxu0 0.0
    %580 = vmatpush1.xpose.msra.mxu0 0.0
    %581 = vmatprep.subr.mxu0 0.0
    %582 = vmatpush1.xpose.msra.mxu0 0.0
    %583 = vmatprep.subr.mxu0 0.0
    %584 = vmatpush1.xpose.msra.mxu0 0.0
    %585 = vmatprep.subr.mxu0 0.0
    %586 = vmatpush1.xpose.msra.mxu0 0.0
    %587 = vmatprep.subr.mxu0 0.0
    %588 = vmatpush1.xpose.msra.mxu0 0.0
    %589 = vmatprep.subr.mxu0 0.0
    %590 = vmatpush1.xpose.msra.mxu0 0.0
    %591 = vmatprep.subr.mxu0 0.0
    %592 = vmatpush1.xpose.msra.mxu0 0.0
    %593 = vmatprep.subr.mxu0 0.0
    %594 = vmatpush1.xpose.msra.mxu0 0.0
    %595 = vmatprep.subr.mxu0 0.0
    %596 = vmatpush1.xpose.msra.mxu0 0.0
    %597 = vmatprep.subr.mxu0 0.0
    %598 = vmatpush1.xpose.msra.mxu0 0.0
    %599 = vmatprep.subr.mxu0 0.0
    %600 = vmatpush1.xpose.msra.mxu0 0.0
    %601 = vmatprep.subr.mxu0 0.0
    %602 = vmatpush1.xpose.msra.mxu0 0.0
    %603 = vmatprep.subr.mxu0 0.0
    %604 = vmatpush1.xpose.msra.mxu0 0.0
    %605 = vmatprep.subr.mxu0 0.0
    %606 = vmatpush1.xpose.msra.mxu0 0.0
    %607 = vmatprep.subr.mxu0 0.0
    %608 = vmatpush1.xpose.msra.mxu0 0.0
    %609 = vmatprep.subr.mxu0 0.0
    %610 = vmatpush1.xpose.msra.mxu0 0.0
    %611 = vmatprep.subr.mxu0 0.0
    %612 = vmatpush1.xpose.msra.mxu0 0.0
    %613 = vmatprep.subr.mxu0 0.0
    %614 = vmatpush1.xpose.msra.mxu0 0.0
    %615 = vmatprep.mubr.f32.mxu0 0.0
    %616 = vmatmul.mubr.f32.gmra.mrb[0].mxu0 %v353
    %v617 = vpop.f32.mrb[0].mxu0
    %v618 = vadd.f32 0.0, %v617
    %v619 = vpop.f32.mrb[0].mxu0
    %620 = vdwg.mxu0
    %vm621 = vcmask 64512
    %v622 = vsel %vm621, %v618, -inf
    %623 = vmax.xlane.f32.xlu0 %v622
    %v624 = vpop.xlane.xlu0 %623
    %v625 = vsub.f32 %v618, %v624
    %v626 = vmul.f32 %v625, 1.442695
    %v627 = vpow.pop %v626
    %v628 = vsel %vm621, %v627, 0.0
    %629 = vadd.xlane.f32.xlu0 %v628
    %v630 = vpop.xlane.xlu0 %629
    %v631 = vrcp.pop %v630
    %v632 = vmul.f32 %v627, %v631
    %v634 = vsel %vm621, %v632, 0
    %636 = vmatprep.subr.mxu0 0.0
    %637 = vmatpush1.msra.mxu0 %v543
    %638 = vmatprep.subr.mxu0 0.0
    %639 = vmatpush1.msra.mxu0 0.0
    %640 = vmatprep.subr.mxu0 0.0
    %641 = vmatpush1.msra.mxu0 0.0
    %642 = vmatprep.subr.mxu0 0.0
    %643 = vmatpush1.msra.mxu0 0.0
    %644 = vmatprep.subr.mxu0 0.0
    %645 = vmatpush1.msra.mxu0 0.0
    %646 = vmatprep.subr.mxu0 0.0
    %647 = vmatpush1.msra.mxu0 0.0
    %648 = vmatprep.subr.mxu0 0.0
    %649 = vmatpush1.msra.mxu0 0.0
    %650 = vmatprep.subr.mxu0 0.0
    %651 = vmatpush1.msra.mxu0 0.0
    %652 = vmatprep.subr.mxu0 0.0
    %653 = vmatpush1.msra.mxu0 0.0
    %654 = vmatprep.subr.mxu0 0.0
    %655 = vmatpush1.msra.mxu0 0.0
    %656 = vmatprep.subr.mxu0 0.0
    %657 = vmatpush1.msra.mxu0 0.0
    %658 = vmatprep.subr.mxu0 0.0
    %659 = vmatpush1.msra.mxu0 0.0
    %660 = vmatprep.subr.mxu0 0.0
    %661 = vmatpush1.msra.mxu0 0.0
    %662 = vmatprep.subr.mxu0 0.0
    %663 = vmatpush1.msra.mxu0 0.0
    %664 = vmatprep.subr.mxu0 0.0
    %665 = vmatpush1.msra.mxu0 0.0
    %666 = vmatprep.subr.mxu0 0.0
    %667 = vmatpush1.msra.mxu0 0.0
    %668 = vmatprep.subr.mxu0 0.0
    %669 = vmatpush1.msra.mxu0 0.0
    %670 = vmatprep.subr.mxu0 0.0
    %671 = vmatpush1.msra.mxu0 0.0
    %672 = vmatprep.subr.mxu0 0.0
    %673 = vmatpush1.msra.mxu0 0.0
    %674 = vmatprep.subr.mxu0 0.0
    %675 = vmatpush1.msra.mxu0 0.0
    %676 = vmatprep.subr.mxu0 0.0
    %677 = vmatpush1.msra.mxu0 0.0
    %678 = vmatprep.subr.mxu0 0.0
    %679 = vmatpush1.msra.mxu0 0.0
    %680 = vmatprep.subr.mxu0 0.0
    %681 = vmatpush1.msra.mxu0 0.0
    %682 = vmatprep.subr.mxu0 0.0
    %683 = vmatpush1.msra.mxu0 0.0
    %684 = vmatprep.subr.mxu0 0.0
    %685 = vmatpush1.msra.mxu0 0.0
    %686 = vmatprep.subr.mxu0 0.0
    %687 = vmatpush1.msra.mxu0 0.0
    %688 = vmatprep.subr.mxu0 0.0
    %689 = vmatpush1.msra.mxu0 0.0
    %690 = vmatprep.subr.mxu0 0.0
    %691 = vmatpush1.msra.mxu0 0.0
    %692 = vmatprep.subr.mxu0 0.0
    %693 = vmatpush1.msra.mxu0 0.0
    %694 = vmatprep.subr.mxu0 0.0
    %695 = vmatpush1.msra.mxu0 0.0
    %696 = vmatprep.subr.mxu0 0.0
    %697 = vmatpush1.msra.mxu0 0.0
    %698 = vmatprep.subr.mxu0 0.0
    %699 = vmatpush1.msra.mxu0 0.0
    %700 = vmatprep.mubr.f32.mxu0 0.0
    %701 = vmatmul.mubr.f32.gmra.mrb[0].mxu0 %v634
    %v702 = vpop.f32.mrb[0].mxu0
    %v703 = vadd.f32 0.0, %v702
    %v704 = vpop.f32.mrb[0].mxu0
    %705 = vdwg.mxu0
    %v706 = vsel %vm621, %v632, 0.0
    %v707 = vrot.slane %v706, 4
    %v708 = vadd.f32 %v706, %v707
    %v709 = vrot.slane %v708, 2
    %v710 = vadd.f32 %v708, %v709
    %v711 = vrot.slane %v710, 1
    %v712 = vadd.f32 %v710, %v711
    %v713 = vrcp.pop 8.0
    %v714 = vmul.f32 %v712, %v713
    %715 = vmatprep.subr.mxu0 0.0
    %716 = vmatpush1.xpose.msra.mxu0 %v450
    %717 = vmatprep.subr.mxu0 0.0
    %718 = vmatpush1.xpose.msra.mxu0 0.0
    %719 = vmatprep.subr.mxu0 0.0
    %720 = vmatpush1.xpose.msra.mxu0 0.0
    %721 = vmatprep.subr.mxu0 0.0
    %722 = vmatpush1.xpose.msra.mxu0 0.0
    %723 = vmatprep.subr.mxu0 0.0
    %724 = vmatpush1.xpose.msra.mxu0 0.0
    %725 = vmatprep.subr.mxu0 0.0
    %726 = vmatpush1.xpose.msra.mxu0 0.0
    %727 = vmatprep.subr.mxu0 0.0
    %728 = vmatpush1.xpose.msra.mxu0 0.0
    %729 = vmatprep.subr.mxu0 0.0
    %730 = vmatpush1.xpose.msra.mxu0 0.0
    %731 = vmatprep.subr.mxu0 0.0
    %732 = vmatpush1.xpose.msra.mxu0 0.0
    %733 = vmatprep.subr.mxu0 0.0
    %734 = vmatpush1.xpose.msra.mxu0 0.0
    %735 = vmatprep.subr.mxu0 0.0
    %736 = vmatpush1.xpose.msra.mxu0 0.0
    %737 = vmatprep.subr.mxu0 0.0
    %738 = vmatpush1.xpose.msra.mxu0 0.0
    %739 = vmatprep.subr.mxu0 0.0
    %740 = vmatpush1.xpose.msra.mxu0 0.0
    %741 = vmatprep.subr.mxu0 0.0
    %742 = vmatpush1.xpose.msra.mxu0 0.0
    %743 = vmatprep.subr.mxu0 0.0
    %744 = vmatpush1.xpose.msra.mxu0 0.0
    %745 = vmatprep.subr.mxu0 0.0
    %746 = vmatpush1.xpose.msra.mxu0 0.0
    %747 = vmatprep.subr.mxu0 0.0
    %748 = vmatpush1.xpose.msra.mxu0 0.0
    %749 = vmatprep.subr.mxu0 0.0
    %750 = vmatpush1.xpose.msra.mxu0 0.0
    %751 = vmatprep.subr.mxu0 0.0
    %752 = vmatpush1.xpose.msra.mxu0 0.0
    %753 = vmatprep.subr.mxu0 0.0
    %754 = vmatpush1.xpose.msra.mxu0 0.0
    %755 = vmatprep.subr.mxu0 0.0
    %756 = vmatpush1.xpose.msra.mxu0 0.0
    %757 = vmatprep.subr.mxu0 0.0
    %758 = vmatpush1.xpose.msra.mxu0 0.0
    %759 = vmatprep.subr.mxu0 0.0
    %760 = vmatpush1.xpose.msra.mxu0 0.0
    %761 = vmatprep.subr.mxu0 0.0
    %762 = vmatpush1.xpose.msra.mxu0 0.0
    %763 = vmatprep.subr.mxu0 0.0
    %764 = vmatpush1.xpose.msra.mxu0 0.0
    %765 = vmatprep.subr.mxu0 0.0
    %766 = vmatpush1.xpose.msra.mxu0 0.0
    %767 = vmatprep.subr.mxu0 0.0
    %768 = vmatpush1.xpose.msra.mxu0 0.0
    %769 = vmatprep.subr.mxu0 0.0
    %770 = vmatpush1.xpose.msra.mxu0 0.0
    %771 = vmatprep.subr.mxu0 0.0
    %772 = vmatpush1.xpose.msra.mxu0 0.0
    %773 = vmatprep.subr.mxu0 0.0
    %774 = vmatpush1.xpose.msra.mxu0 0.0
    %775 = vmatprep.subr.mxu0 0.0
    %776 = vmatpush1.xpose.msra.mxu0 0.0
    %777 = vmatprep.subr.mxu0 0.0
    %778 = vmatpush1.xpose.msra.mxu0 0.0
    %779 = vmatprep.mubr.f32.mxu0 0.0
    %780 = vmatmul.mubr.f32.gmra.mrb[0].mxu0 %v354
    %v781 = vpop.f32.mrb[0].mxu0
    %v782 = vadd.f32 0.0, %v781
    %v783 = vpop.f32.mrb[0].mxu0
    %784 = vdwg.mxu0
    %v785 = vsel %vm621, %v782, -inf
    %786 = vmax.xlane.f32.xlu0 %v785
    %v787 = vpop.xlane.xlu0 %786
    %v788 = vsub.f32 %v782, %v787
    %v789 = vmul.f32 %v788, 1.442695
    %v790 = vpow.pop %v789
    %v791 = vsel %vm621, %v790, 0.0
    %792 = vadd.xlane.f32.xlu0 %v791
    %v793 = vpop.xlane.xlu0 %792
    %v794 = vrcp.pop %v793
    %v795 = vmul.f32 %v790, %v794
    %v797 = vsel %vm621, %v795, 0
    %799 = vmatprep.subr.mxu0 0.0
    %800 = vmatpush1.msra.mxu0 %v548
    %801 = vmatprep.subr.mxu0 0.0
    %802 = vmatpush1.msra.mxu0 0.0
    %803 = vmatprep.subr.mxu0 0.0
    %804 = vmatpush1.msra.mxu0 0.0
    %805 = vmatprep.subr.mxu0 0.0
    %806 = vmatpush1.msra.mxu0 0.0
    %807 = vmatprep.subr.mxu0 0.0
    %808 = vmatpush1.msra.mxu0 0.0
    %809 = vmatprep.subr.mxu0 0.0
    %810 = vmatpush1.msra.mxu0 0.0
    %811 = vmatprep.subr.mxu0 0.0
    %812 = vmatpush1.msra.mxu0 0.0
    %813 = vmatprep.subr.mxu0 0.0
    %814 = vmatpush1.msra.mxu0 0.0
    %815 = vmatprep.subr.mxu0 0.0
    %816 = vmatpush1.msra.mxu0 0.0
    %817 = vmatprep.subr.mxu0 0.0
    %818 = vmatpush1.msra.mxu0 0.0
    %819 = vmatprep.subr.mxu0 0.0
    %820 = vmatpush1.msra.mxu0 0.0
    %821 = vmatprep.subr.mxu0 0.0
    %822 = vmatpush1.msra.mxu0 0.0
    %823 = vmatprep.subr.mxu0 0.0
    %824 = vmatpush1.msra.mxu0 0.0
    %825 = vmatprep.subr.mxu0 0.0
    %826 = vmatpush1.msra.mxu0 0.0
    %827 = vmatprep.subr.mxu0 0.0
    %828 = vmatpush1.msra.mxu0 0.0
    %829 = vmatprep.subr.mxu0 0.0
    %830 = vmatpush1.msra.mxu0 0.0
    %831 = vmatprep.subr.mxu0 0.0
    %832 = vmatpush1.msra.mxu0 0.0
    %833 = vmatprep.subr.mxu0 0.0
    %834 = vmatpush1.msra.mxu0 0.0
    %835 = vmatprep.subr.mxu0 0.0
    %836 = vmatpush1.msra.mxu0 0.0
    %837 = vmatprep.subr.mxu0 0.0
    %838 = vmatpush1.msra.mxu0 0.0
    %839 = vmatprep.subr.mxu0 0.0
    %840 = vmatpush1.msra.mxu0 0.0
    %841 = vmatprep.subr.mxu0 0.0
    %842 = vmatpush1.msra.mxu0 0.0
    %843 = vmatprep.subr.mxu0 0.0
    %844 = vmatpush1.msra.mxu0 0.0
    %845 = vmatprep.subr.mxu0 0.0
    %846 = vmatpush1.msra.mxu0 0.0
    %847 = vmatprep.subr.mxu0 0.0
    %848 = vmatpush1.msra.mxu0 0.0
    %849 = vmatprep.subr.mxu0 0.0
    %850 = vmatpush1.msra.mxu0 0.0
    %851 = vmatprep.subr.mxu0 0.0
    %852 = vmatpush1.msra.mxu0 0.0
    %853 = vmatprep.subr.mxu0 0.0
    %854 = vmatpush1.msra.mxu0 0.0
    %855 = vmatprep.subr.mxu0 0.0
    %856 = vmatpush1.msra.mxu0 0.0
    %857 = vmatprep.subr.mxu0 0.0
    %858 = vmatpush1.msra.mxu0 0.0
    %859 = vmatprep.subr.mxu0 0.0
    %860 = vmatpush1.msra.mxu0 0.0
    %861 = vmatprep.subr.mxu0 0.0
    %862 = vmatpush1.msra.mxu0 0.0
    %863 = vmatprep.mubr.f32.mxu0 0.0
    %864 = vmatmul.mubr.f32.gmra.mrb[0].mxu0 %v797
    %v865 = vpop.f32.mrb[0].mxu0
    %v866 = vadd.f32 0.0, %v865
    %v867 = vpop.f32.mrb[0].mxu0
    %868 = vdwg.mxu0
    %v869 = vsel %vm621, %v795, 0.0
    %v870 = vrot.slane %v869, 4
    %v871 = vadd.f32 %v869, %v870
    %v872 = vrot.slane %v871, 2
    %v873 = vadd.f32 %v871, %v872
    %v874 = vrot.slane %v873, 1
    %v875 = vadd.f32 %v873, %v874
    %v876 = vmul.f32 %v875, %v713
    %vm877 = vcmask 1040384
    %v878 = vsel %vm877, %v714, %v876
    %vm879 = vcmask 58368
    %880 = vst.msk [vmem:[#allocation12] sm:$0x3] %vm879, %v878
    %v881 = vld [vmem:[#allocation8] sm:$0xff]
    %v882 = vld [vmem:[#allocation8 + $0x8] sm:$0xff]
    %v883 = vld [vmem:[#allocation8 + $0x10] sm:$0xff]
    %v884 = vld [vmem:[#allocation8 + $0x18] sm:$0xff]
    %v885 = vld [vmem:[#allocation8 + $0x20] sm:$0xff]
    %v886 = vld [vmem:[#allocation8 + $0x28] sm:$0xff]
    %v887 = vld [vmem:[#allocation8 + $0x30] sm:$0xff]
    %v888 = vld [vmem:[#allocation8 + $0x38] sm:$0xff]
    %v889 = vld [vmem:[#allocation8 + $0x40] sm:$0xff]
    %v890 = vld [vmem:[#allocation8 + $0x48] sm:$0xff]
    %v891 = vld [vmem:[#allocation8 + $0x50] sm:$0xff]
    %v892 = vld [vmem:[#allocation8 + $0x58] sm:$0xff]
    %v893 = vld [vmem:[#allocation8 + $0x60] sm:$0xff]
    %v894 = vld [vmem:[#allocation8 + $0x68] sm:$0xff]
    %v895 = vld [vmem:[#allocation8 + $0x70] sm:$0xff]
    %v896 = vld [vmem:[#allocation8 + $0x78] sm:$0xff]
    %v897 = vld [vmem:[%s9] sm:$0x1]
    %v899 = vlaneseq
    %v900 = vshrl.u32 %v899, 7
    %v901 = vsub.s32 0, %v900
    %v902 = vrot.slane %v897, %v901
    %904 = vmatprep.subr.mxu0 0.0
    %905 = vmatpush1.msra.mxu0 %v881
    %906 = vmatprep.subr.mxu0 0.0
    %907 = vmatpush1.msra.mxu0 %v882
    %908 = vmatprep.subr.mxu0 0.0
    %909 = vmatpush1.msra.mxu0 %v883
    %910 = vmatprep.subr.mxu0 0.0
    %911 = vmatpush1.msra.mxu0 %v884
    %912 = vmatprep.subr.mxu0 0.0
    %913 = vmatpush1.msra.mxu0 %v885
    %914 = vmatprep.subr.mxu0 0.0
    %915 = vmatpush1.msra.mxu0 %v886
    %916 = vmatprep.subr.mxu0 0.0
    %917 = vmatpush1.msra.mxu0 %v887
    %918 = vmatprep.subr.mxu0 0.0
    %919 = vmatpush1.msra.mxu0 %v888
    %920 = vmatprep.subr.mxu0 0.0
    %921 = vmatpush1.msra.mxu0 %v889
    %922 = vmatprep.subr.mxu0 0.0
    %923 = vmatpush1.msra.mxu0 %v890
    %924 = vmatprep.subr.mxu0 0.0
    %925 = vmatpush1.msra.mxu0 %v891
    %926 = vmatprep.subr.mxu0 0.0
    %927 = vmatpush1.msra.mxu0 %v892
    %928 = vmatprep.subr.mxu0 0.0
    %929 = vmatpush1.msra.mxu0 %v893
    %930 = vmatprep.subr.mxu0 0.0
    %931 = vmatpush1.msra.mxu0 %v894
    %932 = vmatprep.subr.mxu0 0.0
    %933 = vmatpush1.msra.mxu0 %v895
    %934 = vmatprep.subr.mxu0 0.0
    %935 = vmatpush1.msra.mxu0 %v896
    %936 = vmatprep.subr.mxu0 0.0
    %937 = vmatpush1.msra.mxu0 0.0
    %938 = vmatprep.subr.mxu0 0.0
    %939 = vmatpush1.msra.mxu0 0.0
    %940 = vmatprep.subr.mxu0 0.0
    %941 = vmatpush1.msra.mxu0 0.0
    %942 = vmatprep.subr.mxu0 0.0
    %943 = vmatpush1.msra.mxu0 0.0
    %944 = vmatprep.subr.mxu0 0.0
    %945 = vmatpush1.msra.mxu0 0.0
    %946 = vmatprep.subr.mxu0 0.0
    %947 = vmatpush1.msra.mxu0 0.0
    %948 = vmatprep.subr.mxu0 0.0
    %949 = vmatpush1.msra.mxu0 0.0
    %950 = vmatprep.subr.mxu0 0.0
    %951 = vmatpush1.msra.mxu0 0.0
    %952 = vmatprep.subr.mxu0 0.0
    %953 = vmatpush1.msra.mxu0 0.0
    %954 = vmatprep.subr.mxu0 0.0
    %955 = vmatpush1.msra.mxu0 0.0
    %956 = vmatprep.subr.mxu0 0.0
    %957 = vmatpush1.msra.mxu0 0.0
    %958 = vmatprep.subr.mxu0 0.0
    %959 = vmatpush1.msra.mxu0 0.0
    %960 = vmatprep.subr.mxu0 0.0
    %961 = vmatpush1.msra.mxu0 0.0
    %962 = vmatprep.subr.mxu0 0.0
    %963 = vmatpush1.msra.mxu0 0.0
    %964 = vmatprep.subr.mxu0 0.0
    %965 = vmatpush1.msra.mxu0 0.0
    %966 = vmatprep.subr.mxu0 0.0
    %967 = vmatpush1.msra.mxu0 0.0
    %968 = vmatprep.mubr.f32.mxu0 0.0
    %969 = vmatmul.mubr.f32.gmra.mrb[0].mxu0 %v703
    %v970 = vpop.f32.mrb[0].mxu0
    %v971 = vadd.f32 %v902, %v970
    %v972 = vpop.f32.mrb[0].mxu0
    %973 = vmatprep.mubr.f32.mxu0 0.0
    %974 = vmatmul.mubr.f32.gmra.mrb[0].mxu0 %v866
    %v975 = vpop.f32.mrb[0].mxu0
    %v976 = vadd.f32 %v902, %v975
    %v977 = vpop.f32.mrb[0].mxu0
    %978 = vdwg.mxu0
    %v979 = vadd.f32 %v971, %v247
    %v980 = vadd.f32 %v976, %v252
    %981 = vadd.xlane.f32.xlu0 %v979
    %v982 = vpop.xlane.xlu0 %981
    %983 = vadd.xlane.f32.xlu0 %v980
    %v984 = vpop.xlane.xlu0 %983
    %v985 = vrcp.pop 128.0
    %v986 = vmul.f32 %v982, %v985
    %v987 = vmul.f32 %v984, %v985
    %v988 = vsub.f32 %v979, %v986
    %v989 = vsub.f32 %v980, %v987
    %v990 = vmul.f32 %v988, %v988
    %v991 = vmul.f32 %v989, %v989
    %992 = vadd.xlane.f32.xlu0 %v990
    %v993 = vpop.xlane.xlu0 %992
    %994 = vadd.xlane.f32.xlu0 %v991
    %v995 = vpop.xlane.xlu0 %994
    %v996 = vmul.f32 %v993, %v985
    %v997 = vmul.f32 %v995, %v985
    %v998 = vadd.f32 %v996, 1e-05
    %v999 = vadd.f32 %v997, 1e-05
    %v1000 = vrsqrt.pop %v998
    %v1001 = vrsqrt.pop %v999
    %v1002 = vmul.f32 %v988, %v1000
    %v1003 = vmul.f32 %v989, %v1001
    %v1004 = vld [vmem:[%s10] sm:$0x1]
    %v1006 = vlaneseq
    %v1007 = vshrl.u32 %v1006, 7
    %v1008 = vsub.s32 0, %v1007
    %v1009 = vrot.slane %v1004, %v1008
    %v1011 = vmul.f32 %v1002, %v1009
    %v1012 = vmul.f32 %v1003, %v1009
    %v1013 = vld [vmem:[%s11] sm:$0x1]
    %v1015 = vlaneseq
    %v1016 = vshrl.u32 %v1015, 7
    %v1017 = vsub.s32 0, %v1016
    %v1018 = vrot.slane %v1013, %v1017
    %v1020 = vadd.f32 %v1011, %v1018
    %v1021 = vadd.f32 %v1012, %v1018
    %v1023 = vrot.slane %v1021, 7
    %v1025 = vsel %vm877, %v1020, %v1023
    %v1026 = vld [vmem:[#allocation10] sm:$0xff]
    %v1027 = vld [vmem:[#allocation10 + $0x8] sm:$0xff]
    %v1028 = vld [vmem:[#allocation10 + $0x10] sm:$0xff]
    %v1029 = vld [vmem:[#allocation10 + $0x18] sm:$0xff]
    %v1030 = vld [vmem:[#allocation10 + $0x20] sm:$0xff]
    %v1031 = vld [vmem:[#allocation10 + $0x28] sm:$0xff]
    %v1032 = vld [vmem:[#allocation10 + $0x30] sm:$0xff]
    %v1033 = vld [vmem:[#allocation10 + $0x38] sm:$0xff]
    %v1034 = vld [vmem:[#allocation10 + $0x40] sm:$0xff]
    %v1035 = vld [vmem:[#allocation10 + $0x48] sm:$0xff]
    %v1036 = vld [vmem:[#allocation10 + $0x50] sm:$0xff]
    %v1037 = vld [vmem:[#allocation10 + $0x58] sm:$0xff]
    %v1038 = vld [vmem:[#allocation10 + $0x60] sm:$0xff]
    %v1039 = vld [vmem:[#allocation10 + $0x68] sm:$0xff]
    %v1040 = vld [vmem:[#allocation10 + $0x70] sm:$0xff]
    %v1041 = vld [vmem:[#allocation10 + $0x78] sm:$0xff]
    %v1043 = vrot.slane %v1020, 1
    %v1045 = vsel %vm877, %v1043, %v1021
    %v1046 = vld [vmem:[#allocation10 + $0x80] sm:$0xff]
    %v1047 = vld [vmem:[#allocation10 + $0x88] sm:$0xff]
    %v1048 = vld [vmem:[#allocation10 + $0x90] sm:$0xff]
    %v1049 = vld [vmem:[#allocation10 + $0x98] sm:$0xff]
    %v1050 = vld [vmem:[#allocation10 + $0xa0] sm:$0xff]
    %v1051 = vld [vmem:[#allocation10 + $0xa8] sm:$0xff]
    %v1052 = vld [vmem:[#allocation10 + $0xb0] sm:$0xff]
    %v1053 = vld [vmem:[#allocation10 + $0xb8] sm:$0xff]
    %v1054 = vld [vmem:[#allocation10 + $0xc0] sm:$0xff]
    %v1055 = vld [vmem:[#allocation10 + $0xc8] sm:$0xff]
    %v1056 = vld [vmem:[#allocation10 + $0xd0] sm:$0xff]
    %v1057 = vld [vmem:[#allocation10 + $0xd8] sm:$0xff]
    %v1058 = vld [vmem:[#allocation10 + $0xe0] sm:$0xff]
    %v1059 = vld [vmem:[#allocation10 + $0xe8] sm:$0xff]
    %v1060 = vld [vmem:[#allocation10 + $0xf0] sm:$0xff]
    %v1061 = vld [vmem:[#allocation10 + $0xf8] sm:$0xff]
    %1062 = vmatprep.subr.mxu0 0.0
    %1063 = vmatpush1.msra.mxu0 %v1046
    %1064 = vmatprep.subr.mxu0 0.0
    %1065 = vmatpush1.msra.mxu0 %v1047
    %1066 = vmatprep.subr.mxu0 0.0
    %1067 = vmatpush1.msra.mxu0 %v1048
    %1068 = vmatprep.subr.mxu0 0.0
    %1069 = vmatpush1.msra.mxu0 %v1049
    %1070 = vmatprep.subr.mxu0 0.0
    %1071 = vmatpush1.msra.mxu0 %v1050
    %1072 = vmatprep.subr.mxu0 0.0
    %1073 = vmatpush1.msra.mxu0 %v1051
    %1074 = vmatprep.subr.mxu0 0.0
    %1075 = vmatpush1.msra.mxu0 %v1052
    %1076 = vmatprep.subr.mxu0 0.0
    %1077 = vmatpush1.msra.mxu0 %v1053
    %1078 = vmatprep.subr.mxu0 0.0
    %1079 = vmatpush1.msra.mxu0 %v1054
    %1080 = vmatprep.subr.mxu0 0.0
    %1081 = vmatpush1.msra.mxu0 %v1055
    %1082 = vmatprep.subr.mxu0 0.0
    %1083 = vmatpush1.msra.mxu0 %v1056
    %1084 = vmatprep.subr.mxu0 0.0
    %1085 = vmatpush1.msra.mxu0 %v1057
    %1086 = vmatprep.subr.mxu0 0.0
    %1087 = vmatpush1.msra.mxu0 %v1058
    %1088 = vmatprep.subr.mxu0 0.0
    %1089 = vmatpush1.msra.mxu0 %v1059
    %1090 = vmatprep.subr.mxu0 0.0
    %1091 = vmatpush1.msra.mxu0 %v1060
    %1092 = vmatprep.subr.mxu0 0.0
    %1093 = vmatpush1.msra.mxu0 %v1061
    %1094 = vmatprep.subr.mxu0 0.0
    %1095 = vmatpush1.msra.mxu0 0.0
    %1096 = vmatprep.subr.mxu0 0.0
    %1097 = vmatpush1.msra.mxu0 0.0
    %1098 = vmatprep.subr.mxu0 0.0
    %1099 = vmatpush1.msra.mxu0 0.0
    %1100 = vmatprep.subr.mxu0 0.0
    %1101 = vmatpush1.msra.mxu0 0.0
    %1102 = vmatprep.subr.mxu0 0.0
    %1103 = vmatpush1.msra.mxu0 0.0
    %1104 = vmatprep.subr.mxu0 0.0
    %1105 = vmatpush1.msra.mxu0 0.0
    %1106 = vmatprep.subr.mxu0 0.0
    %1107 = vmatpush1.msra.mxu0 0.0
    %1108 = vmatprep.subr.mxu0 0.0
    %1109 = vmatpush1.msra.mxu0 0.0
    %1110 = vmatprep.subr.mxu0 0.0
    %1111 = vmatpush1.msra.mxu0 0.0
    %1112 = vmatprep.subr.mxu0 0.0
    %1113 = vmatpush1.msra.mxu0 0.0
    %1114 = vmatprep.subr.mxu0 0.0
    %1115 = vmatpush1.msra.mxu0 0.0
    %1116 = vmatprep.subr.mxu0 0.0
    %1117 = vmatpush1.msra.mxu0 0.0
    %1118 = vmatprep.subr.mxu0 0.0
    %1119 = vmatpush1.msra.mxu0 0.0
    %1120 = vmatprep.subr.mxu0 0.0
    %1121 = vmatpush1.msra.mxu0 0.0
    %1122 = vmatprep.subr.mxu0 0.0
    %1123 = vmatpush1.msra.mxu0 0.0
    %1124 = vmatprep.subr.mxu0 0.0
    %1125 = vmatpush1.msra.mxu0 0.0
    %1126 = vmatprep.mubr.f32.mxu0 0.0
    %1127 = vmatmul.mubr.f32.gmra.mrb[0].mxu0 %v1045
    %v1128 = vpop.f32.mrb[0].mxu0
    %v1129 = vadd.f32 0.0, %v1128
    %v1130 = vpop.f32.mrb[0].mxu0
    %1131 = vdwg.mxu0
    %1132 = vmatprep.subr.mxu0 0.0
    %1133 = vmatpush1.msra.mxu0 %v1026
    %1134 = vmatprep.subr.mxu0 0.0
    %1135 = vmatpush1.msra.mxu0 %v1027
    %1136 = vmatprep.subr.mxu0 0.0
    %1137 = vmatpush1.msra.mxu0 %v1028
    %1138 = vmatprep.subr.mxu0 0.0
    %1139 = vmatpush1.msra.mxu0 %v1029
    %1140 = vmatprep.subr.mxu0 0.0
    %1141 = vmatpush1.msra.mxu0 %v1030
    %1142 = vmatprep.subr.mxu0 0.0
    %1143 = vmatpush1.msra.mxu0 %v1031
    %1144 = vmatprep.subr.mxu0 0.0
    %1145 = vmatpush1.msra.mxu0 %v1032
    %1146 = vmatprep.subr.mxu0 0.0
    %1147 = vmatpush1.msra.mxu0 %v1033
    %1148 = vmatprep.subr.mxu0 0.0
    %1149 = vmatpush1.msra.mxu0 %v1034
    %1150 = vmatprep.subr.mxu0 0.0
    %1151 = vmatpush1.msra.mxu0 %v1035
    %1152 = vmatprep.subr.mxu0 0.0
    %1153 = vmatpush1.msra.mxu0 %v1036
    %1154 = vmatprep.subr.mxu0 0.0
    %1155 = vmatpush1.msra.mxu0 %v1037
    %1156 = vmatprep.subr.mxu0 0.0
    %1157 = vmatpush1.msra.mxu0 %v1038
    %1158 = vmatprep.subr.mxu0 0.0
    %1159 = vmatpush1.msra.mxu0 %v1039
    %1160 = vmatprep.subr.mxu0 0.0
    %1161 = vmatpush1.msra.mxu0 %v1040
    %1162 = vmatprep.subr.mxu0 0.0
    %1163 = vmatpush1.msra.mxu0 %v1041
    %1164 = vmatprep.subr.mxu0 0.0
    %1165 = vmatpush1.msra.mxu0 0.0
    %1166 = vmatprep.subr.mxu0 0.0
    %1167 = vmatpush1.msra.mxu0 0.0
    %1168 = vmatprep.subr.mxu0 0.0
    %1169 = vmatpush1.msra.mxu0 0.0
    %1170 = vmatprep.subr.mxu0 0.0
    %1171 = vmatpush1.msra.mxu0 0.0
    %1172 = vmatprep.subr.mxu0 0.0
    %1173 = vmatpush1.msra.mxu0 0.0
    %1174 = vmatprep.subr.mxu0 0.0
    %1175 = vmatpush1.msra.mxu0 0.0
    %1176 = vmatprep.subr.mxu0 0.0
    %1177 = vmatpush1.msra.mxu0 0.0
    %1178 = vmatprep.subr.mxu0 0.0
    %1179 = vmatpush1.msra.mxu0 0.0
    %1180 = vmatprep.subr.mxu0 0.0
    %1181 = vmatpush1.msra.mxu0 0.0
    %1182 = vmatprep.subr.mxu0 0.0
    %1183 = vmatpush1.msra.mxu0 0.0
    %1184 = vmatprep.subr.mxu0 0.0
    %1185 = vmatpush1.msra.mxu0 0.0
    %1186 = vmatprep.subr.mxu0 0.0
    %1187 = vmatpush1.msra.mxu0 0.0
    %1188 = vmatprep.subr.mxu0 0.0
    %1189 = vmatpush1.msra.mxu0 0.0
    %1190 = vmatprep.subr.mxu0 0.0
    %1191 = vmatpush1.msra.mxu0 0.0
    %1192 = vmatprep.subr.mxu0 0.0
    %1193 = vmatpush1.msra.mxu0 0.0
    %1194 = vmatprep.subr.mxu0 0.0
    %1195 = vmatpush1.msra.mxu0 0.0
    %1196 = vmatprep.mubr.f32.mxu0 0.0
    %1197 = vmatmul.mubr.f32.gmra.mrb[0].mxu0 %v1025
    %v1198 = vpop.f32.mrb[0].mxu0
    %v1199 = vadd.f32 %v1129, %v1198
    %v1200 = vpop.f32.mrb[0].mxu0
    %1201 = vdwg.mxu0
    %v1202 = vrot.slane %v1020, 2
    %v1204 = vrot.slane %v1021, 1
    %v1206 = vsel %vm877, %v1202, %v1204
    %v1207 = vld [vmem:[#allocation10 + $0x100] sm:$0xff]
    %v1208 = vld [vmem:[#allocation10 + $0x108] sm:$0xff]
    %v1209 = vld [vmem:[#allocation10 + $0x110] sm:$0xff]
    %v1210 = vld [vmem:[#allocation10 + $0x118] sm:$0xff]
    %v1211 = vld [vmem:[#allocation10 + $0x120] sm:$0xff]
    %v1212 = vld [vmem:[#allocation10 + $0x128] sm:$0xff]
    %v1213 = vld [vmem:[#allocation10 + $0x130] sm:$0xff]
    %v1214 = vld [vmem:[#allocation10 + $0x138] sm:$0xff]
    %v1215 = vld [vmem:[#allocation10 + $0x140] sm:$0xff]
    %v1216 = vld [vmem:[#allocation10 + $0x148] sm:$0xff]
    %v1217 = vld [vmem:[#allocation10 + $0x150] sm:$0xff]
    %v1218 = vld [vmem:[#allocation10 + $0x158] sm:$0xff]
    %v1219 = vld [vmem:[#allocation10 + $0x160] sm:$0xff]
    %v1220 = vld [vmem:[#allocation10 + $0x168] sm:$0xff]
    %v1221 = vld [vmem:[#allocation10 + $0x170] sm:$0xff]
    %v1222 = vld [vmem:[#allocation10 + $0x178] sm:$0xff]
    %1223 = vmatprep.subr.mxu0 0.0
    %1224 = vmatpush1.msra.mxu0 %v1207
    %1225 = vmatprep.subr.mxu0 0.0
    %1226 = vmatpush1.msra.mxu0 %v1208
    %1227 = vmatprep.subr.mxu0 0.0
    %1228 = vmatpush1.msra.mxu0 %v1209
    %1229 = vmatprep.subr.mxu0 0.0
    %1230 = vmatpush1.msra.mxu0 %v1210
    %1231 = vmatprep.subr.mxu0 0.0
    %1232 = vmatpush1.msra.mxu0 %v1211
    %1233 = vmatprep.subr.mxu0 0.0
    %1234 = vmatpush1.msra.mxu0 %v1212
    %1235 = vmatprep.subr.mxu0 0.0
    %1236 = vmatpush1.msra.mxu0 %v1213
    %1237 = vmatprep.subr.mxu0 0.0
    %1238 = vmatpush1.msra.mxu0 %v1214
    %1239 = vmatprep.subr.mxu0 0.0
    %1240 = vmatpush1.msra.mxu0 %v1215
    %1241 = vmatprep.subr.mxu0 0.0
    %1242 = vmatpush1.msra.mxu0 %v1216
    %1243 = vmatprep.subr.mxu0 0.0
    %1244 = vmatpush1.msra.mxu0 %v1217
    %1245 = vmatprep.subr.mxu0 0.0
    %1246 = vmatpush1.msra.mxu0 %v1218
    %1247 = vmatprep.subr.mxu0 0.0
    %1248 = vmatpush1.msra.mxu0 %v1219
    %1249 = vmatprep.subr.mxu0 0.0
    %1250 = vmatpush1.msra.mxu0 %v1220
    %1251 = vmatprep.subr.mxu0 0.0
    %1252 = vmatpush1.msra.mxu0 %v1221
    %1253 = vmatprep.subr.mxu0 0.0
    %1254 = vmatpush1.msra.mxu0 %v1222
    %1255 = vmatprep.subr.mxu0 0.0
    %1256 = vmatpush1.msra.mxu0 0.0
    %1257 = vmatprep.subr.mxu0 0.0
    %1258 = vmatpush1.msra.mxu0 0.0
    %1259 = vmatprep.subr.mxu0 0.0
    %1260 = vmatpush1.msra.mxu0 0.0
    %1261 = vmatprep.subr.mxu0 0.0
    %1262 = vmatpush1.msra.mxu0 0.0
    %1263 = vmatprep.subr.mxu0 0.0
    %1264 = vmatpush1.msra.mxu0 0.0
    %1265 = vmatprep.subr.mxu0 0.0
    %1266 = vmatpush1.msra.mxu0 0.0
    %1267 = vmatprep.subr.mxu0 0.0
    %1268 = vmatpush1.msra.mxu0 0.0
    %1269 = vmatprep.subr.mxu0 0.0
    %1270 = vmatpush1.msra.mxu0 0.0
    %1271 = vmatprep.subr.mxu0 0.0
    %1272 = vmatpush1.msra.mxu0 0.0
    %1273 = vmatprep.subr.mxu0 0.0
    %1274 = vmatpush1.msra.mxu0 0.0
    %1275 = vmatprep.subr.mxu0 0.0
    %1276 = vmatpush1.msra.mxu0 0.0
    %1277 = vmatprep.subr.mxu0 0.0
    %1278 = vmatpush1.msra.mxu0 0.0
    %1279 = vmatprep.subr.mxu0 0.0
    %1280 = vmatpush1.msra.mxu0 0.0
    %1281 = vmatprep.subr.mxu0 0.0
    %1282 = vmatpush1.msra.mxu0 0.0
    %1283 = vmatprep.subr.mxu0 0.0
    %1284 = vmatpush1.msra.mxu0 0.0
    %1285 = vmatprep.subr.mxu0 0.0
    %1286 = vmatpush1.msra.mxu0 0.0
    %1287 = vmatprep.mubr.f32.mxu0 0.0
    %1288 = vmatmul.mubr.f32.gmra.mrb[0].mxu0 %v1206
    %v1289 = vpop.f32.mrb[0].mxu0
    %v1290 = vadd.f32 0.0, %v1289
    %v1291 = vpop.f32.mrb[0].mxu0
    %1292 = vdwg.mxu0
    %v1293 = vadd.f32 %v1199, %v1290
    %v1294 = vrot.slane %v1020, 3
    %v1296 = vrot.slane %v1021, 2
    %v1298 = vsel %vm877, %v1294, %v1296
    %v1299 = vld [vmem:[#allocation10 + $0x180] sm:$0xff]
    %v1300 = vld [vmem:[#allocation10 + $0x188] sm:$0xff]
    %v1301 = vld [vmem:[#allocation10 + $0x190] sm:$0xff]
    %v1302 = vld [vmem:[#allocation10 + $0x198] sm:$0xff]
    %v1303 = vld [vmem:[#allocation10 + $0x1a0] sm:$0xff]
    %v1304 = vld [vmem:[#allocation10 + $0x1a8] sm:$0xff]
    %v1305 = vld [vmem:[#allocation10 + $0x1b0] sm:$0xff]
    %v1306 = vld [vmem:[#allocation10 + $0x1b8] sm:$0xff]
    %v1307 = vld [vmem:[#allocation10 + $0x1c0] sm:$0xff]
    %v1308 = vld [vmem:[#allocation10 + $0x1c8] sm:$0xff]
    %v1309 = vld [vmem:[#allocation10 + $0x1d0] sm:$0xff]
    %v1310 = vld [vmem:[#allocation10 + $0x1d8] sm:$0xff]
    %v1311 = vld [vmem:[#allocation10 + $0x1e0] sm:$0xff]
    %v1312 = vld [vmem:[#allocation10 + $0x1e8] sm:$0xff]
    %v1313 = vld [vmem:[#allocation10 + $0x1f0] sm:$0xff]
    %v1314 = vld [vmem:[#allocation10 + $0x1f8] sm:$0xff]
    %1315 = vmatprep.subr.mxu0 0.0
    %1316 = vmatpush1.msra.mxu0 %v1299
    %1317 = vmatprep.subr.mxu0 0.0
    %1318 = vmatpush1.msra.mxu0 %v1300
    %1319 = vmatprep.subr.mxu0 0.0
    %1320 = vmatpush1.msra.mxu0 %v1301
    %1321 = vmatprep.subr.mxu0 0.0
    %1322 = vmatpush1.msra.mxu0 %v1302
    %1323 = vmatprep.subr.mxu0 0.0
    %1324 = vmatpush1.msra.mxu0 %v1303
    %1325 = vmatprep.subr.mxu0 0.0
    %1326 = vmatpush1.msra.mxu0 %v1304
    %1327 = vmatprep.subr.mxu0 0.0
    %1328 = vmatpush1.msra.mxu0 %v1305
    %1329 = vmatprep.subr.mxu0 0.0
    %1330 = vmatpush1.msra.mxu0 %v1306
    %1331 = vmatprep.subr.mxu0 0.0
    %1332 = vmatpush1.msra.mxu0 %v1307
    %1333 = vmatprep.subr.mxu0 0.0
    %1334 = vmatpush1.msra.mxu0 %v1308
    %1335 = vmatprep.subr.mxu0 0.0
    %1336 = vmatpush1.msra.mxu0 %v1309
    %1337 = vmatprep.subr.mxu0 0.0
    %1338 = vmatpush1.msra.mxu0 %v1310
    %1339 = vmatprep.subr.mxu0 0.0
    %1340 = vmatpush1.msra.mxu0 %v1311
    %1341 = vmatprep.subr.mxu0 0.0
    %1342 = vmatpush1.msra.mxu0 %v1312
    %1343 = vmatprep.subr.mxu0 0.0
    %1344 = vmatpush1.msra.mxu0 %v1313
    %1345 = vmatprep.subr.mxu0 0.0
    %1346 = vmatpush1.msra.mxu0 %v1314
    %1347 = vmatprep.subr.mxu0 0.0
    %1348 = vmatpush1.msra.mxu0 0.0
    %1349 = vmatprep.subr.mxu0 0.0
    %1350 = vmatpush1.msra.mxu0 0.0
    %1351 = vmatprep.subr.mxu0 0.0
    %1352 = vmatpush1.msra.mxu0 0.0
    %1353 = vmatprep.subr.mxu0 0.0
    %1354 = vmatpush1.msra.mxu0 0.0
    %1355 = vmatprep.subr.mxu0 0.0
    %1356 = vmatpush1.msra.mxu0 0.0
    %1357 = vmatprep.subr.mxu0 0.0
    %1358 = vmatpush1.msra.mxu0 0.0
    %1359 = vmatprep.subr.mxu0 0.0
    %1360 = vmatpush1.msra.mxu0 0.0
    %1361 = vmatprep.subr.mxu0 0.0
    %1362 = vmatpush1.msra.mxu0 0.0
    %1363 = vmatprep.subr.mxu0 0.0
    %1364 = vmatpush1.msra.mxu0 0.0
    %1365 = vmatprep.subr.mxu0 0.0
    %1366 = vmatpush1.msra.mxu0 0.0
    %1367 = vmatprep.subr.mxu0 0.0
    %1368 = vmatpush1.msra.mxu0 0.0
    %1369 = vmatprep.subr.mxu0 0.0
    %1370 = vmatpush1.msra.mxu0 0.0
    %1371 = vmatprep.subr.mxu0 0.0
    %1372 = vmatpush1.msra.mxu0 0.0
    %1373 = vmatprep.subr.mxu0 0.0
    %1374 = vmatpush1.msra.mxu0 0.0
    %1375 = vmatprep.subr.mxu0 0.0
    %1376 = vmatpush1.msra.mxu0 0.0
    %1377 = vmatprep.subr.mxu0 0.0
    %1378 = vmatpush1.msra.mxu0 0.0
    %1379 = vmatprep.mubr.f32.mxu0 0.0
    %1380 = vmatmul.mubr.f32.gmra.mrb[0].mxu0 %v1298
    %v1381 = vpop.f32.mrb[0].mxu0
    %v1382 = vadd.f32 0.0, %v1381
    %v1383 = vpop.f32.mrb[0].mxu0
    %1384 = vdwg.mxu0
    %v1385 = vadd.f32 %v1293, %v1382
    %v1386 = vrot.slane %v1020, 4
    %v1388 = vrot.slane %v1021, 3
    %v1390 = vsel %vm877, %v1386, %v1388
    %v1391 = vld [vmem:[#allocation10 + $0x200] sm:$0xff]
    %v1392 = vld [vmem:[#allocation10 + $0x208] sm:$0xff]
    %v1393 = vld [vmem:[#allocation10 + $0x210] sm:$0xff]
    %v1394 = vld [vmem:[#allocation10 + $0x218] sm:$0xff]
    %v1395 = vld [vmem:[#allocation10 + $0x220] sm:$0xff]
    %v1396 = vld [vmem:[#allocation10 + $0x228] sm:$0xff]
    %v1397 = vld [vmem:[#allocation10 + $0x230] sm:$0xff]
    %v1398 = vld [vmem:[#allocation10 + $0x238] sm:$0xff]
    %v1399 = vld [vmem:[#allocation10 + $0x240] sm:$0xff]
    %v1400 = vld [vmem:[#allocation10 + $0x248] sm:$0xff]
    %v1401 = vld [vmem:[#allocation10 + $0x250] sm:$0xff]
    %v1402 = vld [vmem:[#allocation10 + $0x258] sm:$0xff]
    %v1403 = vld [vmem:[#allocation10 + $0x260] sm:$0xff]
    %v1404 = vld [vmem:[#allocation10 + $0x268] sm:$0xff]
    %v1405 = vld [vmem:[#allocation10 + $0x270] sm:$0xff]
    %v1406 = vld [vmem:[#allocation10 + $0x278] sm:$0xff]
    %1407 = vmatprep.subr.mxu0 0.0
    %1408 = vmatpush1.msra.mxu0 %v1391
    %1409 = vmatprep.subr.mxu0 0.0
    %1410 = vmatpush1.msra.mxu0 %v1392
    %1411 = vmatprep.subr.mxu0 0.0
    %1412 = vmatpush1.msra.mxu0 %v1393
    %1413 = vmatprep.subr.mxu0 0.0
    %1414 = vmatpush1.msra.mxu0 %v1394
    %1415 = vmatprep.subr.mxu0 0.0
    %1416 = vmatpush1.msra.mxu0 %v1395
    %1417 = vmatprep.subr.mxu0 0.0
    %1418 = vmatpush1.msra.mxu0 %v1396
    %1419 = vmatprep.subr.mxu0 0.0
    %1420 = vmatpush1.msra.mxu0 %v1397
    %1421 = vmatprep.subr.mxu0 0.0
    %1422 = vmatpush1.msra.mxu0 %v1398
    %1423 = vmatprep.subr.mxu0 0.0
    %1424 = vmatpush1.msra.mxu0 %v1399
    %1425 = vmatprep.subr.mxu0 0.0
    %1426 = vmatpush1.msra.mxu0 %v1400
    %1427 = vmatprep.subr.mxu0 0.0
    %1428 = vmatpush1.msra.mxu0 %v1401
    %1429 = vmatprep.subr.mxu0 0.0
    %1430 = vmatpush1.msra.mxu0 %v1402
    %1431 = vmatprep.subr.mxu0 0.0
    %1432 = vmatpush1.msra.mxu0 %v1403
    %1433 = vmatprep.subr.mxu0 0.0
    %1434 = vmatpush1.msra.mxu0 %v1404
    %1435 = vmatprep.subr.mxu0 0.0
    %1436 = vmatpush1.msra.mxu0 %v1405
    %1437 = vmatprep.subr.mxu0 0.0
    %1438 = vmatpush1.msra.mxu0 %v1406
    %1439 = vmatprep.subr.mxu0 0.0
    %1440 = vmatpush1.msra.mxu0 0.0
    %1441 = vmatprep.subr.mxu0 0.0
    %1442 = vmatpush1.msra.mxu0 0.0
    %1443 = vmatprep.subr.mxu0 0.0
    %1444 = vmatpush1.msra.mxu0 0.0
    %1445 = vmatprep.subr.mxu0 0.0
    %1446 = vmatpush1.msra.mxu0 0.0
    %1447 = vmatprep.subr.mxu0 0.0
    %1448 = vmatpush1.msra.mxu0 0.0
    %1449 = vmatprep.subr.mxu0 0.0
    %1450 = vmatpush1.msra.mxu0 0.0
    %1451 = vmatprep.subr.mxu0 0.0
    %1452 = vmatpush1.msra.mxu0 0.0
    %1453 = vmatprep.subr.mxu0 0.0
    %1454 = vmatpush1.msra.mxu0 0.0
    %1455 = vmatprep.subr.mxu0 0.0
    %1456 = vmatpush1.msra.mxu0 0.0
    %1457 = vmatprep.subr.mxu0 0.0
    %1458 = vmatpush1.msra.mxu0 0.0
    %1459 = vmatprep.subr.mxu0 0.0
    %1460 = vmatpush1.msra.mxu0 0.0
    %1461 = vmatprep.subr.mxu0 0.0
    %1462 = vmatpush1.msra.mxu0 0.0
    %1463 = vmatprep.subr.mxu0 0.0
    %1464 = vmatpush1.msra.mxu0 0.0
    %1465 = vmatprep.subr.mxu0 0.0
    %1466 = vmatpush1.msra.mxu0 0.0
    %1467 = vmatprep.subr.mxu0 0.0
    %1468 = vmatpush1.msra.mxu0 0.0
    %1469 = vmatprep.subr.mxu0 0.0
    %1470 = vmatpush1.msra.mxu0 0.0
    %1471 = vmatprep.mubr.f32.mxu0 0.0
    %1472 = vmatmul.mubr.f32.gmra.mrb[0].mxu0 %v1390
    %v1473 = vpop.f32.mrb[0].mxu0
    %v1474 = vadd.f32 0.0, %v1473
    %v1475 = vpop.f32.mrb[0].mxu0
    %1476 = vdwg.mxu0
    %v1477 = vadd.f32 %v1385, %v1474
    %v1478 = vrot.slane %v1020, 5
    %v1480 = vrot.slane %v1021, 4
    %v1482 = vsel %vm877, %v1478, %v1480
    %v1483 = vld [vmem:[#allocation10 + $0x280] sm:$0xff]
    %v1484 = vld [vmem:[#allocation10 + $0x288] sm:$0xff]
    %v1485 = vld [vmem:[#allocation10 + $0x290] sm:$0xff]
    %v1486 = vld [vmem:[#allocation10 + $0x298] sm:$0xff]
    %v1487 = vld [vmem:[#allocation10 + $0x2a0] sm:$0xff]
    %v1488 = vld [vmem:[#allocation10 + $0x2a8] sm:$0xff]
    %v1489 = vld [vmem:[#allocation10 + $0x2b0] sm:$0xff]
    %v1490 = vld [vmem:[#allocation10 + $0x2b8] sm:$0xff]
    %v1491 = vld [vmem:[#allocation10 + $0x2c0] sm:$0xff]
    %v1492 = vld [vmem:[#allocation10 + $0x2c8] sm:$0xff]
    %v1493 = vld [vmem:[#allocation10 + $0x2d0] sm:$0xff]
    %v1494 = vld [vmem:[#allocation10 + $0x2d8] sm:$0xff]
    %v1495 = vld [vmem:[#allocation10 + $0x2e0] sm:$0xff]
    %v1496 = vld [vmem:[#allocation10 + $0x2e8] sm:$0xff]
    %v1497 = vld [vmem:[#allocation10 + $0x2f0] sm:$0xff]
    %v1498 = vld [vmem:[#allocation10 + $0x2f8] sm:$0xff]
    %1499 = vmatprep.subr.mxu0 0.0
    %1500 = vmatpush1.msra.mxu0 %v1483
    %1501 = vmatprep.subr.mxu0 0.0
    %1502 = vmatpush1.msra.mxu0 %v1484
    %1503 = vmatprep.subr.mxu0 0.0
    %1504 = vmatpush1.msra.mxu0 %v1485
    %1505 = vmatprep.subr.mxu0 0.0
    %1506 = vmatpush1.msra.mxu0 %v1486
    %1507 = vmatprep.subr.mxu0 0.0
    %1508 = vmatpush1.msra.mxu0 %v1487
    %1509 = vmatprep.subr.mxu0 0.0
    %1510 = vmatpush1.msra.mxu0 %v1488
    %1511 = vmatprep.subr.mxu0 0.0
    %1512 = vmatpush1.msra.mxu0 %v1489
    %1513 = vmatprep.subr.mxu0 0.0
    %1514 = vmatpush1.msra.mxu0 %v1490
    %1515 = vmatprep.subr.mxu0 0.0
    %1516 = vmatpush1.msra.mxu0 %v1491
    %1517 = vmatprep.subr.mxu0 0.0
    %1518 = vmatpush1.msra.mxu0 %v1492
    %1519 = vmatprep.subr.mxu0 0.0
    %1520 = vmatpush1.msra.mxu0 %v1493
    %1521 = vmatprep.subr.mxu0 0.0
    %1522 = vmatpush1.msra.mxu0 %v1494
    %1523 = vmatprep.subr.mxu0 0.0
    %1524 = vmatpush1.msra.mxu0 %v1495
    %1525 = vmatprep.subr.mxu0 0.0
    %1526 = vmatpush1.msra.mxu0 %v1496
    %1527 = vmatprep.subr.mxu0 0.0
    %1528 = vmatpush1.msra.mxu0 %v1497
    %1529 = vmatprep.subr.mxu0 0.0
    %1530 = vmatpush1.msra.mxu0 %v1498
    %1531 = vmatprep.subr.mxu0 0.0
    %1532 = vmatpush1.msra.mxu0 0.0
    %1533 = vmatprep.subr.mxu0 0.0
    %1534 = vmatpush1.msra.mxu0 0.0
    %1535 = vmatprep.subr.mxu0 0.0
    %1536 = vmatpush1.msra.mxu0 0.0
    %1537 = vmatprep.subr.mxu0 0.0
    %1538 = vmatpush1.msra.mxu0 0.0
    %1539 = vmatprep.subr.mxu0 0.0
    %1540 = vmatpush1.msra.mxu0 0.0
    %1541 = vmatprep.subr.mxu0 0.0
    %1542 = vmatpush1.msra.mxu0 0.0
    %1543 = vmatprep.subr.mxu0 0.0
    %1544 = vmatpush1.msra.mxu0 0.0
    %1545 = vmatprep.subr.mxu0 0.0
    %1546 = vmatpush1.msra.mxu0 0.0
    %1547 = vmatprep.subr.mxu0 0.0
    %1548 = vmatpush1.msra.mxu0 0.0
    %1549 = vmatprep.subr.mxu0 0.0
    %1550 = vmatpush1.msra.mxu0 0.0
    %1551 = vmatprep.subr.mxu0 0.0
    %1552 = vmatpush1.msra.mxu0 0.0
    %1553 = vmatprep.subr.mxu0 0.0
    %1554 = vmatpush1.msra.mxu0 0.0
    %1555 = vmatprep.subr.mxu0 0.0
    %1556 = vmatpush1.msra.mxu0 0.0
    %1557 = vmatprep.subr.mxu0 0.0
    %1558 = vmatpush1.msra.mxu0 0.0
    %1559 = vmatprep.subr.mxu0 0.0
    %1560 = vmatpush1.msra.mxu0 0.0
    %1561 = vmatprep.subr.mxu0 0.0
    %1562 = vmatpush1.msra.mxu0 0.0
    %1563 = vmatprep.mubr.f32.mxu0 0.0
    %1564 = vmatmul.mubr.f32.gmra.mrb[0].mxu0 %v1482
    %v1565 = vpop.f32.mrb[0].mxu0
    %v1566 = vadd.f32 0.0, %v1565
    %v1567 = vpop.f32.mrb[0].mxu0
    %1568 = vdwg.mxu0
    %v1569 = vadd.f32 %v1477, %v1566
    %v1570 = vrot.slane %v1020, 6
    %v1572 = vrot.slane %v1021, 5
    %v1574 = vsel %vm877, %v1570, %v1572
    %v1575 = vld [vmem:[#allocation10 + $0x300] sm:$0xff]
    %v1576 = vld [vmem:[#allocation10 + $0x308] sm:$0xff]
    %v1577 = vld [vmem:[#allocation10 + $0x310] sm:$0xff]
    %v1578 = vld [vmem:[#allocation10 + $0x318] sm:$0xff]
    %v1579 = vld [vmem:[#allocation10 + $0x320] sm:$0xff]
    %v1580 = vld [vmem:[#allocation10 + $0x328] sm:$0xff]
    %v1581 = vld [vmem:[#allocation10 + $0x330] sm:$0xff]
    %v1582 = vld [vmem:[#allocation10 + $0x338] sm:$0xff]
    %v1583 = vld [vmem:[#allocation10 + $0x340] sm:$0xff]
    %v1584 = vld [vmem:[#allocation10 + $0x348] sm:$0xff]
    %v1585 = vld [vmem:[#allocation10 + $0x350] sm:$0xff]
    %v1586 = vld [vmem:[#allocation10 + $0x358] sm:$0xff]
    %v1587 = vld [vmem:[#allocation10 + $0x360] sm:$0xff]
    %v1588 = vld [vmem:[#allocation10 + $0x368] sm:$0xff]
    %v1589 = vld [vmem:[#allocation10 + $0x370] sm:$0xff]
    %v1590 = vld [vmem:[#allocation10 + $0x378] sm:$0xff]
    %1591 = vmatprep.subr.mxu0 0.0
    %1592 = vmatpush1.msra.mxu0 %v1575
    %1593 = vmatprep.subr.mxu0 0.0
    %1594 = vmatpush1.msra.mxu0 %v1576
    %1595 = vmatprep.subr.mxu0 0.0
    %1596 = vmatpush1.msra.mxu0 %v1577
    %1597 = vmatprep.subr.mxu0 0.0
    %1598 = vmatpush1.msra.mxu0 %v1578
    %1599 = vmatprep.subr.mxu0 0.0
    %1600 = vmatpush1.msra.mxu0 %v1579
    %1601 = vmatprep.subr.mxu0 0.0
    %1602 = vmatpush1.msra.mxu0 %v1580
    %1603 = vmatprep.subr.mxu0 0.0
    %1604 = vmatpush1.msra.mxu0 %v1581
    %1605 = vmatprep.subr.mxu0 0.0
    %1606 = vmatpush1.msra.mxu0 %v1582
    %1607 = vmatprep.subr.mxu0 0.0
    %1608 = vmatpush1.msra.mxu0 %v1583
    %1609 = vmatprep.subr.mxu0 0.0
    %1610 = vmatpush1.msra.mxu0 %v1584
    %1611 = vmatprep.subr.mxu0 0.0
    %1612 = vmatpush1.msra.mxu0 %v1585
    %1613 = vmatprep.subr.mxu0 0.0
    %1614 = vmatpush1.msra.mxu0 %v1586
    %1615 = vmatprep.subr.mxu0 0.0
    %1616 = vmatpush1.msra.mxu0 %v1587
    %1617 = vmatprep.subr.mxu0 0.0
    %1618 = vmatpush1.msra.mxu0 %v1588
    %1619 = vmatprep.subr.mxu0 0.0
    %1620 = vmatpush1.msra.mxu0 %v1589
    %1621 = vmatprep.subr.mxu0 0.0
    %1622 = vmatpush1.msra.mxu0 %v1590
    %1623 = vmatprep.subr.mxu0 0.0
    %1624 = vmatpush1.msra.mxu0 0.0
    %1625 = vmatprep.subr.mxu0 0.0
    %1626 = vmatpush1.msra.mxu0 0.0
    %1627 = vmatprep.subr.mxu0 0.0
    %1628 = vmatpush1.msra.mxu0 0.0
    %1629 = vmatprep.subr.mxu0 0.0
    %1630 = vmatpush1.msra.mxu0 0.0
    %1631 = vmatprep.subr.mxu0 0.0
    %1632 = vmatpush1.msra.mxu0 0.0
    %1633 = vmatprep.subr.mxu0 0.0
    %1634 = vmatpush1.msra.mxu0 0.0
    %1635 = vmatprep.subr.mxu0 0.0
    %1636 = vmatpush1.msra.mxu0 0.0
    %1637 = vmatprep.subr.mxu0 0.0
    %1638 = vmatpush1.msra.mxu0 0.0
    %1639 = vmatprep.subr.mxu0 0.0
    %1640 = vmatpush1.msra.mxu0 0.0
    %1641 = vmatprep.subr.mxu0 0.0
    %1642 = vmatpush1.msra.mxu0 0.0
    %1643 = vmatprep.subr.mxu0 0.0
    %1644 = vmatpush1.msra.mxu0 0.0
    %1645 = vmatprep.subr.mxu0 0.0
    %1646 = vmatpush1.msra.mxu0 0.0
    %1647 = vmatprep.subr.mxu0 0.0
    %1648 = vmatpush1.msra.mxu0 0.0
    %1649 = vmatprep.subr.mxu0 0.0
    %1650 = vmatpush1.msra.mxu0 0.0
    %1651 = vmatprep.subr.mxu0 0.0
    %1652 = vmatpush1.msra.mxu0 0.0
    %1653 = vmatprep.subr.mxu0 0.0
    %1654 = vmatpush1.msra.mxu0 0.0
    %1655 = vmatprep.mubr.f32.mxu0 0.0
    %1656 = vmatmul.mubr.f32.gmra.mrb[0].mxu0 %v1574
    %v1657 = vpop.f32.mrb[0].mxu0
    %v1658 = vadd.f32 0.0, %v1657
    %v1659 = vpop.f32.mrb[0].mxu0
    %1660 = vdwg.mxu0
    %v1661 = vadd.f32 %v1569, %v1658
    %v1662 = vrot.slane %v1020, 7
    %v1664 = vrot.slane %v1021, 6
    %v1666 = vsel %vm877, %v1662, %v1664
    %v1667 = vld [vmem:[#allocation10 + $0x380] sm:$0xff]
    %v1668 = vld [vmem:[#allocation10 + $0x388] sm:$0xff]
    %v1669 = vld [vmem:[#allocation10 + $0x390] sm:$0xff]
    %v1670 = vld [vmem:[#allocation10 + $0x398] sm:$0xff]
    %v1671 = vld [vmem:[#allocation10 + $0x3a0] sm:$0xff]
    %v1672 = vld [vmem:[#allocation10 + $0x3a8] sm:$0xff]
    %v1673 = vld [vmem:[#allocation10 + $0x3b0] sm:$0xff]
    %v1674 = vld [vmem:[#allocation10 + $0x3b8] sm:$0xff]
    %v1675 = vld [vmem:[#allocation10 + $0x3c0] sm:$0xff]
    %v1676 = vld [vmem:[#allocation10 + $0x3c8] sm:$0xff]
    %v1677 = vld [vmem:[#allocation10 + $0x3d0] sm:$0xff]
    %v1678 = vld [vmem:[#allocation10 + $0x3d8] sm:$0xff]
    %v1679 = vld [vmem:[#allocation10 + $0x3e0] sm:$0xff]
    %v1680 = vld [vmem:[#allocation10 + $0x3e8] sm:$0xff]
    %v1681 = vld [vmem:[#allocation10 + $0x3f0] sm:$0xff]
    %v1682 = vld [vmem:[#allocation10 + $0x3f8] sm:$0xff]
    %1683 = vmatprep.subr.mxu0 0.0
    %1684 = vmatpush1.msra.mxu0 %v1667
    %1685 = vmatprep.subr.mxu0 0.0
    %1686 = vmatpush1.msra.mxu0 %v1668
    %1687 = vmatprep.subr.mxu0 0.0
    %1688 = vmatpush1.msra.mxu0 %v1669
    %1689 = vmatprep.subr.mxu0 0.0
    %1690 = vmatpush1.msra.mxu0 %v1670
    %1691 = vmatprep.subr.mxu0 0.0
    %1692 = vmatpush1.msra.mxu0 %v1671
    %1693 = vmatprep.subr.mxu0 0.0
    %1694 = vmatpush1.msra.mxu0 %v1672
    %1695 = vmatprep.subr.mxu0 0.0
    %1696 = vmatpush1.msra.mxu0 %v1673
    %1697 = vmatprep.subr.mxu0 0.0
    %1698 = vmatpush1.msra.mxu0 %v1674
    %1699 = vmatprep.subr.mxu0 0.0
    %1700 = vmatpush1.msra.mxu0 %v1675
    %1701 = vmatprep.subr.mxu0 0.0
    %1702 = vmatpush1.msra.mxu0 %v1676
    %1703 = vmatprep.subr.mxu0 0.0
    %1704 = vmatpush1.msra.mxu0 %v1677
    %1705 = vmatprep.subr.mxu0 0.0
    %1706 = vmatpush1.msra.mxu0 %v1678
    %1707 = vmatprep.subr.mxu0 0.0
    %1708 = vmatpush1.msra.mxu0 %v1679
    %1709 = vmatprep.subr.mxu0 0.0
    %1710 = vmatpush1.msra.mxu0 %v1680
    %1711 = vmatprep.subr.mxu0 0.0
    %1712 = vmatpush1.msra.mxu0 %v1681
    %1713 = vmatprep.subr.mxu0 0.0
    %1714 = vmatpush1.msra.mxu0 %v1682
    %1715 = vmatprep.subr.mxu0 0.0
    %1716 = vmatpush1.msra.mxu0 0.0
    %1717 = vmatprep.subr.mxu0 0.0
    %1718 = vmatpush1.msra.mxu0 0.0
    %1719 = vmatprep.subr.mxu0 0.0
    %1720 = vmatpush1.msra.mxu0 0.0
    %1721 = vmatprep.subr.mxu0 0.0
    %1722 = vmatpush1.msra.mxu0 0.0
    %1723 = vmatprep.subr.mxu0 0.0
    %1724 = vmatpush1.msra.mxu0 0.0
    %1725 = vmatprep.subr.mxu0 0.0
    %1726 = vmatpush1.msra.mxu0 0.0
    %1727 = vmatprep.subr.mxu0 0.0
    %1728 = vmatpush1.msra.mxu0 0.0
    %1729 = vmatprep.subr.mxu0 0.0
    %1730 = vmatpush1.msra.mxu0 0.0
    %1731 = vmatprep.subr.mxu0 0.0
    %1732 = vmatpush1.msra.mxu0 0.0
    %1733 = vmatprep.subr.mxu0 0.0
    %1734 = vmatpush1.msra.mxu0 0.0
    %1735 = vmatprep.subr.mxu0 0.0
    %1736 = vmatpush1.msra.mxu0 0.0
    %1737 = vmatprep.subr.mxu0 0.0
    %1738 = vmatpush1.msra.mxu0 0.0
    %1739 = vmatprep.subr.mxu0 0.0
    %1740 = vmatpush1.msra.mxu0 0.0
    %1741 = vmatprep.subr.mxu0 0.0
    %1742 = vmatpush1.msra.mxu0 0.0
    %1743 = vmatprep.subr.mxu0 0.0
    %1744 = vmatpush1.msra.mxu0 0.0
    %1745 = vmatprep.subr.mxu0 0.0
    %1746 = vmatpush1.msra.mxu0 0.0
    %1747 = vmatprep.mubr.f32.mxu0 0.0
    %1748 = vmatmul.mubr.f32.gmra.mrb[0].mxu0 %v1666
    %v1749 = vpop.f32.mrb[0].mxu0
    %v1750 = vadd.f32 0.0, %v1749
    %v1751 = vpop.f32.mrb[0].mxu0
    %1752 = vdwg.mxu0
    %v1753 = vadd.f32 %v1661, %v1750
    %v1754 = vld [vmem:[%s13] sm:$0x1]
    %v1756 = vlaneseq
    %v1757 = vshrl.u32 %v1756, 7
    %v1758 = vsub.s32 0, %v1757
    %v1759 = vrot.slane %v1754, %v1758
    %v1761 = vadd.f32 %v1753, %v1759
    %v1762 = vmul.f32 %v1761, 0.5
    %v1763 = vmul.f32 %v1761, 0.70710677
    %v1764 = verf.f32.pop %v1763
    %v1765 = vadd.f32 %v1764, 1.0
    %v1766 = vmul.f32 %v1762, %v1765
    %v1767 = vld [vmem:[%s14] sm:$0xff]
    %v1768 = vld [vmem:[%s14 + $0x8] sm:$0xff]
    %v1769 = vld [vmem:[%s14 + $0x10] sm:$0xff]
    %v1770 = vld [vmem:[%s14 + $0x18] sm:$0xff]
    %v1771 = vld [vmem:[%s14 + $0x20] sm:$0xff]
    %v1772 = vld [vmem:[%s14 + $0x28] sm:$0xff]
    %v1773 = vld [vmem:[%s14 + $0x30] sm:$0xff]
    %v1774 = vld [vmem:[%s14 + $0x38] sm:$0xff]
    %v1775 = vld [vmem:[%s14 + $0x40] sm:$0xff]
    %v1776 = vld [vmem:[%s14 + $0x48] sm:$0xff]
    %v1777 = vld [vmem:[%s14 + $0x50] sm:$0xff]
    %v1778 = vld [vmem:[%s14 + $0x58] sm:$0xff]
    %v1779 = vld [vmem:[%s14 + $0x60] sm:$0xff]
    %v1780 = vld [vmem:[%s14 + $0x68] sm:$0xff]
    %v1781 = vld [vmem:[%s14 + $0x70] sm:$0xff]
    %v1782 = vld [vmem:[%s14 + $0x78] sm:$0xff]
    %v1783 = vld [vmem:[%s15] sm:$0x1]
    %v1785 = vlaneseq
    %v1786 = vshrl.u32 %v1785, 7
    %v1787 = vsub.s32 0, %v1786
    %v1788 = vrot.slane %v1783, %v1787
    %1790 = vmatprep.subr.mxu0 0.0
    %1791 = vmatpush1.msra.mxu0 %v1767
    %1792 = vmatprep.subr.mxu0 0.0
    %1793 = vmatpush1.msra.mxu0 %v1768
    %1794 = vmatprep.subr.mxu0 0.0
    %1795 = vmatpush1.msra.mxu0 %v1769
    %1796 = vmatprep.subr.mxu0 0.0
    %1797 = vmatpush1.msra.mxu0 %v1770
    %1798 = vmatprep.subr.mxu0 0.0
    %1799 = vmatpush1.msra.mxu0 %v1771
    %1800 = vmatprep.subr.mxu0 0.0
    %1801 = vmatpush1.msra.mxu0 %v1772
    %1802 = vmatprep.subr.mxu0 0.0
    %1803 = vmatpush1.msra.mxu0 %v1773
    %1804 = vmatprep.subr.mxu0 0.0
    %1805 = vmatpush1.msra.mxu0 %v1774
    %1806 = vmatprep.subr.mxu0 0.0
    %1807 = vmatpush1.msra.mxu0 %v1775
    %1808 = vmatprep.subr.mxu0 0.0
    %1809 = vmatpush1.msra.mxu0 %v1776
    %1810 = vmatprep.subr.mxu0 0.0
    %1811 = vmatpush1.msra.mxu0 %v1777
    %1812 = vmatprep.subr.mxu0 0.0
    %1813 = vmatpush1.msra.mxu0 %v1778
    %1814 = vmatprep.subr.mxu0 0.0
    %1815 = vmatpush1.msra.mxu0 %v1779
    %1816 = vmatprep.subr.mxu0 0.0
    %1817 = vmatpush1.msra.mxu0 %v1780
    %1818 = vmatprep.subr.mxu0 0.0
    %1819 = vmatpush1.msra.mxu0 %v1781
    %1820 = vmatprep.subr.mxu0 0.0
    %1821 = vmatpush1.msra.mxu0 %v1782
    %1822 = vmatprep.subr.mxu0 0.0
    %1823 = vmatpush1.msra.mxu0 0.0
    %1824 = vmatprep.subr.mxu0 0.0
    %1825 = vmatpush1.msra.mxu0 0.0
    %1826 = vmatprep.subr.mxu0 0.0
    %1827 = vmatpush1.msra.mxu0 0.0
    %1828 = vmatprep.subr.mxu0 0.0
    %1829 = vmatpush1.msra.mxu0 0.0
    %1830 = vmatprep.subr.mxu0 0.0
    %1831 = vmatpush1.msra.mxu0 0.0
    %1832 = vmatprep.subr.mxu0 0.0
    %1833 = vmatpush1.msra.mxu0 0.0
    %1834 = vmatprep.subr.mxu0 0.0
    %1835 = vmatpush1.msra.mxu0 0.0
    %1836 = vmatprep.subr.mxu0 0.0
    %1837 = vmatpush1.msra.mxu0 0.0
    %1838 = vmatprep.subr.mxu0 0.0
    %1839 = vmatpush1.msra.mxu0 0.0
    %1840 = vmatprep.subr.mxu0 0.0
    %1841 = vmatpush1.msra.mxu0 0.0
    %1842 = vmatprep.subr.mxu0 0.0
    %1843 = vmatpush1.msra.mxu0 0.0
    %1844 = vmatprep.subr.mxu0 0.0
    %1845 = vmatpush1.msra.mxu0 0.0
    %1846 = vmatprep.subr.mxu0 0.0
    %1847 = vmatpush1.msra.mxu0 0.0
    %1848 = vmatprep.subr.mxu0 0.0
    %1849 = vmatpush1.msra.mxu0 0.0
    %1850 = vmatprep.subr.mxu0 0.0
    %1851 = vmatpush1.msra.mxu0 0.0
    %1852 = vmatprep.subr.mxu0 0.0
    %1853 = vmatpush1.msra.mxu0 0.0
    %1854 = vmatprep.mubr.f32.mxu0 0.0
    %1855 = vmatmul.mubr.f32.gmra.mrb[0].mxu0 %v1766
    %v1856 = vpop.f32.mrb[0].mxu0
    %v1857 = vadd.f32 %v1788, %v1856
    %v1858 = vpop.f32.mrb[0].mxu0
    %1859 = vdwg.mxu0
    %1860 = vst.msk [vmem:[#allocation11] sm:$0x3] %vm879, %v1857
    // Predicated region
    $region86: #{tpu_custom_call.1} parent=1 // pred_check
      _
    $region87: #{tpu_custom_call.1} parent=1 // pred_check_branch
      %1862 = sbr.rel (0) target = $region89
    $region88: #{tpu_custom_call.1} parent=1 // pred_region
      %s1864 = ssub.s32 32, 32
      %1865 = vsyncadd [#allocation4], %s1864
      %s1867 = sshll.u32 [#allocation11], 4
      %s1868 = int_to_ptr.vmem [resolvable:$true] %s1867
      %1870 = dma.vmem_to_hbm [thread:$0]  %s1868, 32, %s16, [#allocation4]
    $region89: #{tpu_custom_call.1} parent=1 // pred_fallthru
      _
    // Predicated region
    $region90: #{tpu_custom_call.1} parent=1 // pred_check
      _
    $region91: #{tpu_custom_call.1} parent=1 // pred_check_branch
      %1872 = sbr.rel (0) target = $region93
    $region92: #{tpu_custom_call.1} parent=1 // pred_region
      %s1874 = ssub.s32 32, 32
      %1875 = vsyncadd [#allocation13], %s1874
      %s1877 = sshll.u32 [#allocation12], 4
      %s1878 = int_to_ptr.vmem [resolvable:$true] %s1877
      %1880 = dma.vmem_to_hbm [thread:$0]  %s1878, 32, %s17, [#allocation13]
    $region93: #{tpu_custom_call.1} parent=1 // pred_fallthru
      _
    // Predicated region
    $region94: #{tpu_custom_call.1} parent=1 // pred_check
      _
    $region95: #{tpu_custom_call.1} parent=1 // pred_check_branch
      %1882 = sbr.rel (0) target = $region97
    $region96: #{tpu_custom_call.1} parent=1 // pred_region
      %1883 = dma.done [#allocation4], 32
    $region97: #{tpu_custom_call.1} parent=1 // pred_fallthru
      _
    // Predicated region
    $region98: #{tpu_custom_call.1} parent=1 // pred_check
      _
    $region99: #{tpu_custom_call.1} parent=1 // pred_check_branch
      %1885 = sbr.rel (0) target = $region101
    $region100: #{tpu_custom_call.1} parent=1 // pred_region
      %1886 = dma.done [#allocation13], 32
    $region101: #{tpu_custom_call.1} parent=1 // pred_fallthru
      _
    %1887 = vsyncpa [#allocation3], 1
    %1888 = vsyncpa [#allocation6], 1
    %1889 = vsyncpa [#allocation9], 1
    %1890 = vsyncpa [#allocation4], 1
    %1891 = vsyncpa [#allocation13], 1

</llo_original>
